<compile_context>
chip_gen: v7x
topology: tpu7x:2x2x1
jax: 0.10.0
libtpu: 0.0.40
codegen_flags: <defaults>
</compile_context>

<pallas_src>
import functools

import jax
import jax.numpy as jnp
import numpy as np
from jax.experimental import pallas as pl
from jax.experimental.pallas import tpu as pltpu

# Model hyper-parameters (from the PyTorch module)
INPUT_DIM = 30      # n_bin
HIDDEN_DIM = 64
ENC_H2 = 32
LATENT_DIM = 2
HEADS = 2 * LATENT_DIM     # 4: fused [mu | log_sigma]

# Lane-padded widths used inside the kernel
HEADS_PAD = 32             # heads matmul widened to 32 lanes (cols 4:32 are zero)
OUT32 = 32                 # decoder-2 widened to 32 lanes (cols 30:32 are zero)
OUT_WIDTH = 128            # packed, lane-dense output slab width

# Weight slab rows (each sub-block starts on a multiple-of-8 row, width 128):
R_EW1 = 0        # [30, 64]  encoder.linear1
R_EW2 = 32       # [64, 32]  encoder.linear2
R_HEADS = 96     # [32,  4]  [_enc_mu | _enc_log_sigma] fused (cols 4:128 zero)
R_DW1 = 128      # [ 2, 64]  decoder.linear1
R_DW2 = 136      # [64, 30]  decoder.linear2 (cols 30:128 zero)
W_ROWS = 200
B_ROWS = 8       # bias slab rows: eb1 / eb2 / b_heads / db1 / db2


def vae_kernel(x_ref, eps_ref, w_ref, b_ref, out_ref):
    x = x_ref[...]                                           # [TB, 30]
    eps = eps_ref[...]                                       # [TB, 2]
    tb = x.shape[0]

    # ---- Encoder ----
    ew1 = w_ref[pl.ds(R_EW1, INPUT_DIM), pl.ds(0, HIDDEN_DIM)]     # [30, 64]
    eb1 = b_ref[pl.ds(0, 1), pl.ds(0, HIDDEN_DIM)]                 # [1, 64]
    h1 = jnp.maximum(
        jnp.dot(x, ew1, preferred_element_type=jnp.float32) + eb1, 0.0)

    ew2 = w_ref[pl.ds(R_EW2, HIDDEN_DIM), pl.ds(0, ENC_H2)]        # [64, 32]
    eb2 = b_ref[pl.ds(1, 1), pl.ds(0, ENC_H2)]
    h2 = jnp.maximum(
        jnp.dot(h1, ew2, preferred_element_type=jnp.float32) + eb2, 0.0)

    # Fused latent heads, widened to a 32-lane tile: [mu | log_sigma | 0...].
    wh = w_ref[pl.ds(R_HEADS, ENC_H2), pl.ds(0, HEADS_PAD)]        # [32, 32]
    bh = b_ref[pl.ds(2, 1), pl.ds(0, HEADS_PAD)]
    heads = jnp.dot(h2, wh, preferred_element_type=jnp.float32) + bh   # [TB, 32]
    mu = heads[:, 0:LATENT_DIM]
    log_sigma = heads[:, LATENT_DIM:HEADS]

    # ---- Reparameterization: z = mu + exp(0.5 * log_sigma) * eps ----
    z = mu + jnp.exp(0.5 * log_sigma) * eps                        # [TB, 2]

    # ---- Decoder ----
    # Layer 1: tiny K=2 dot on the (otherwise idle) MXU.
    dw1 = w_ref[pl.ds(R_DW1, LATENT_DIM), pl.ds(0, HIDDEN_DIM)]    # [2, 64]
    db1 = b_ref[pl.ds(3, 1), pl.ds(0, HIDDEN_DIM)]
    d1 = jnp.maximum(
        jnp.dot(z, dw1, preferred_element_type=jnp.float32) + db1, 0.0)

    # Layer 2 widened to 32 lanes (padding columns are exact zeros in the slab).
    dw2 = w_ref[pl.ds(R_DW2, HIDDEN_DIM), pl.ds(0, OUT32)]         # [64, 32]
    db2 = b_ref[pl.ds(4, 1), pl.ds(0, OUT32)]
    recon = jnp.maximum(
        jnp.dot(d1, dw2, preferred_element_type=jnp.float32) + db2, 0.0)   # [TB, 32]

    # ---- Pack outputs with lane-aligned slice stores (no concatenate) ----
    # Slab layout: [ recon 0:30 | 0 | 0 | mu 32:34 | log_sigma 34:36 | zeros ... ]
    out_ref[:, pl.ds(0, 32)] = recon
    out_ref[:, pl.ds(32, 32)] = heads
    out_ref[:, pl.ds(64, 64)] = jnp.zeros((tb, OUT_WIDTH - 64), jnp.float32)


def _round_up(n, m):
    return ((n + m - 1) // m) * m


def _choose_tb(batch):
    """Big tiles amortise the ~0.35us/grid-step overhead; keep >= 2 grid steps
    when the batch allows so ("parallel",) can shard across v7x's 2 TCs
    (harmless on single-TC v5e/v6e)."""
    bp = _round_up(batch, 8)
    if bp <= 16:
        return bp                               # tiny batch: one step
    # otherwise: at least 2 steps, tile capped at 2048 rows
    return min(2048, _round_up((bp + 1) // 2, 8))


def vae_forward_packed(x, eps, w_slab, b_slab, *, tb=None):
    """Run the fused VAE forward.

    Returns the packed [B, 128] output slab (the recommended API for
    consumers, avoiding extra HBM round-trips):
      lanes 0:30  -> reconstruction
      lanes 32:34 -> mu
      lanes 34:36 -> log_sigma
      all other lanes are zero.
    """
    B = x.shape[0]
    if tb is None:
        tb = _choose_tb(B)
    tb = max(8, min(tb, _round_up(B, 8)))
    n_blocks = pl.cdiv(B, tb)
    Bp = n_blocks * tb

    x = x.astype(jnp.float32)
    eps = eps.astype(jnp.float32)
    if Bp != B:
        # Rare fallback; the demo shapes (and typical training batches) avoid it.
        x = jnp.pad(x, ((0, Bp - B), (0, 0)))
        eps = jnp.pad(eps, ((0, Bp - B), (0, 0)))

    flops_per_row = 2 * (INPUT_DIM * HIDDEN_DIM + HIDDEN_DIM * ENC_H2
                         + ENC_H2 * HEADS_PAD + LATENT_DIM * HIDDEN_DIM
                         + HIDDEN_DIM * OUT32)
    cost = pl.CostEstimate(
        flops=int(Bp * flops_per_row),
        transcendentals=int(Bp * LATENT_DIM),
        bytes_accessed=int(4 * (Bp * (INPUT_DIM + LATENT_DIM)
                                + W_ROWS * 128 + B_ROWS * 128
                                + Bp * OUT_WIDTH)),
    )

    out = pl.pallas_call(
        vae_kernel,
        out_shape=jax.ShapeDtypeStruct((Bp, OUT_WIDTH), jnp.float32),
        grid=(n_blocks,),
        in_specs=[
            pl.BlockSpec((tb, INPUT_DIM), lambda i: (i, 0)),    # x per batch tile
            pl.BlockSpec((tb, LATENT_DIM), lambda i: (i, 0)),   # eps per batch tile
            # Constant index_map -> weight / bias slabs stay resident across
            # the grid (single parameter DMA).
            pl.BlockSpec((W_ROWS, 128), lambda i: (0, 0)),
            pl.BlockSpec((B_ROWS, 128), lambda i: (0, 0)),
        ],
        out_specs=pl.BlockSpec((tb, OUT_WIDTH), lambda i: (i, 0)),
        compiler_params=pltpu.CompilerParams(
            dimension_semantics=("parallel",)),
        cost_estimate=cost,
    )(x, eps, w_slab, b_slab)

    if Bp != B:
        out = out[:B]
    return out


def unpack_outputs(out_packed):
    """Convenience splitter (adds slice copies over HBM; prefer consuming the
    packed slab directly in downstream ops)."""
    recon = out_packed[:, 0:INPUT_DIM]
    mu = out_packed[:, 32:32 + LATENT_DIM]
    log_sigma = out_packed[:, 32 + LATENT_DIM:32 + HEADS]
    return recon, mu, log_sigma


# --- parameter construction / packing ---------------------------------------

def init_linear(key, fan_in, fan_out):
    """PyTorch-style uniform(-1/sqrt(fan_in), 1/sqrt(fan_in)) init, stored as
    [in, out] (transposed relative to torch's [out, in]) plus bias [out]."""
    kw, kb = jax.random.split(key)
    bound = 1.0 / np.sqrt(fan_in)
    w = jax.random.uniform(kw, (fan_in, fan_out), jnp.float32, -bound, bound)
    b = jax.random.uniform(kb, (fan_out,), jnp.float32, -bound, bound)
    return w, b


def make_params(key):
    keys = jax.random.split(key, 6)
    ew1, eb1 = init_linear(keys[0], INPUT_DIM, HIDDEN_DIM)    # encoder.linear1
    ew2, eb2 = init_linear(keys[1], HIDDEN_DIM, ENC_H2)       # encoder.linear2
    wmu, bmu = init_linear(keys[2], ENC_H2, LATENT_DIM)       # encoder._enc_mu
    wls, bls = init_linear(keys[3], ENC_H2, LATENT_DIM)       # encoder._enc_log_sigma
    dw1, db1 = init_linear(keys[4], LATENT_DIM, HIDDEN_DIM)   # decoder.linear1
    dw2, db2 = init_linear(keys[5], HIDDEN_DIM, INPUT_DIM)    # decoder.linear2
    return [ew1, eb1, ew2, eb2, wmu, bmu, wls, bls, dw1, db1, dw2, db2]


def pack_params(params):
    """Pack the 12 parameter arrays into one weight slab + one bias slab."""
    ew1, eb1, ew2, eb2, wmu, bmu, wls, bls, dw1, db1, dw2, db2 = \
        [np.asarray(p, np.float32) for p in params]

    w = np.zeros((W_ROWS, 128), np.float32)
    w[R_EW1:R_EW1 + INPUT_DIM, 0:HIDDEN_DIM] = ew1
    w[R_EW2:R_EW2 + HIDDEN_DIM, 0:ENC_H2] = ew2
    w[R_HEADS:R_HEADS + ENC_H2, 0:LATENT_DIM] = wmu
    w[R_HEADS:R_HEADS + ENC_H2, LATENT_DIM:HEADS] = wls
    w[R_DW1:R_DW1 + LATENT_DIM, 0:HIDDEN_DIM] = dw1
    w[R_DW2:R_DW2 + HIDDEN_DIM, 0:INPUT_DIM] = dw2

    b = np.zeros((B_ROWS, 128), np.float32)
    b[0, 0:HIDDEN_DIM] = eb1
    b[1, 0:ENC_H2] = eb2
    b[2, 0:LATENT_DIM] = bmu
    b[2, LATENT_DIM:HEADS] = bls
    b[3, 0:HIDDEN_DIM] = db1
    b[4, 0:INPUT_DIM] = db2

    # The kernel relies on these padding columns being exact zeros (it uses
    # widened 32-lane slices for the heads and decoder-2 matmuls).
    assert np.all(w[R_HEADS:R_HEADS + ENC_H2, HEADS:HEADS_PAD] == 0.0)
    assert np.all(w[R_DW2:R_DW2 + HIDDEN_DIM, INPUT_DIM:OUT32] == 0.0)
    assert np.all(b[2, HEADS:HEADS_PAD] == 0.0)
    assert np.all(b[4, INPUT_DIM:OUT32] == 0.0)
    return jnp.asarray(w), jnp.asarray(b)


def vae_ref(x, eps, params):
    """Pure-JAX reference (full f32 matmul precision)."""
    ew1, eb1, ew2, eb2, wmu, bmu, wls, bls, dw1, db1, dw2, db2 = params
    dot = functools.partial(jnp.dot, precision=jax.lax.Precision.HIGHEST)
    h1 = jnp.maximum(dot(x, ew1) + eb1, 0.0)
    h2 = jnp.maximum(dot(h1, ew2) + eb2, 0.0)
    mu = dot(h2, wmu) + bmu
    ls = dot(h2, wls) + bls
    z = mu + jnp.exp(0.5 * ls) * eps
    d1 = jnp.maximum(dot(z, dw1) + db1, 0.0)
    out = jnp.maximum(dot(d1, dw2) + db2, 0.0)
    return out, mu, ls


if __name__ == "__main__":
    key = jax.random.PRNGKey(0)
    k_x, k_eps, k_p = jax.random.split(key, 3)

    B = 512
    x = jax.random.normal(k_x, (B, INPUT_DIM), jnp.float32)
    # eps drawn outside the kernel (same role as torch.randn_like(sigma))
    eps = jax.random.normal(k_eps, (B, LATENT_DIM), jnp.float32)
    params = make_params(k_p)
    w_slab, b_slab = pack_params(params)

    out_packed = jax.block_until_ready(vae_forward_packed(x, eps, w_slab, b_slab))

    # Correctness check against a pure-JAX reference (unpacking only here, off
    # the hot path). Tolerance accommodates possible multi-pass bf16 MXU
    # rounding inside the kernel vs. the HIGHEST-precision f32 reference.
    recon, mu, log_sigma = unpack_outputs(out_packed)
    r_ref, mu_r, ls_r = vae_ref(x, eps, params)
    np.testing.assert_allclose(np.asarray(recon), np.asarray(r_ref),
                               rtol=5e-3, atol=5e-3)
    np.testing.assert_allclose(np.asarray(mu), np.asarray(mu_r),
                               rtol=5e-3, atol=5e-3)
    np.testing.assert_allclose(np.asarray(log_sigma), np.asarray(ls_r),
                               rtol=5e-3, atol=5e-3)
    # Padding lanes of the slab must be exact zeros.
    np.testing.assert_array_equal(np.asarray(out_packed[:, 30:32]), 0.0)
    np.testing.assert_array_equal(np.asarray(out_packed[:, 36:]), 0.0)

    print("KERNEL_OK")
</pallas_src>

<mosaic_0001>
module attributes {stable_mosaic.version = 11 : i64} {
  func.func @vae_kernel(%arg0: i32, %arg1: memref<256x30xf32, #tpu.memory_space<vmem>>, %arg2: memref<256x2xf32, #tpu.memory_space<vmem>>, %arg3: memref<200x128xf32, #tpu.memory_space<vmem>>, %arg4: memref<8x128xf32, #tpu.memory_space<vmem>>, %arg5: memref<256x128xf32, #tpu.memory_space<vmem>>) attributes {dimension_semantics = [#tpu.dimension_semantics<parallel>], iteration_bounds = array<i64: 2>, scalar_prefetch = 0 : i64, scratch_operands = 0 : i64, tpu.core_type = #tpu.core_type<tc>, window_params = [{transform_indices = @transform_0, window_bounds = array<i64: 256, 30>}, {transform_indices = @transform_1, window_bounds = array<i64: 256, 2>}, {pipeline_mode = #tpu.pipeline_mode<synchronous>, transform_indices = @transform_2, window_bounds = array<i64: 200, 128>}, {pipeline_mode = #tpu.pipeline_mode<synchronous>, transform_indices = @transform_3, window_bounds = array<i64: 8, 128>}, {transform_indices = @transform_4, window_bounds = array<i64: 256, 128>}]} {
    %c0 = arith.constant 0 : index
    %c0_0 = arith.constant 0 : index
    %0 = vector.load %arg1[%c0, %c0_0] : memref<256x30xf32, #tpu.memory_space<vmem>>, vector<256x30xf32>
    %c0_1 = arith.constant 0 : index
    %c0_2 = arith.constant 0 : index
    %1 = vector.load %arg2[%c0_1, %c0_2] : memref<256x2xf32, #tpu.memory_space<vmem>>, vector<256x2xf32>
    %c0_3 = arith.constant 0 : index
    %c0_4 = arith.constant 0 : index
    %2 = vector.load %arg3[%c0_3, %c0_4] : memref<200x128xf32, #tpu.memory_space<vmem>>, vector<30x64xf32>
    %c0_5 = arith.constant 0 : index
    %c0_6 = arith.constant 0 : index
    %3 = vector.load %arg4[%c0_5, %c0_6] : memref<8x128xf32, #tpu.memory_space<vmem>>, vector<1x64xf32>
    %cst = arith.constant dense<0.000000e+00> : vector<256x64xf32>
    %4 = tpu.matmul %0, %2, %cst {dimension_numbers = #tpu.dot_dimension_numbers<[1], [0], [0], [1], [0, 0, 1, 1], [], []>} : vector<256x30xf32>, vector<30x64xf32>, vector<256x64xf32> -> vector<256x64xf32>
    %5 = vector.broadcast %3 : vector<1x64xf32> to vector<256x64xf32>
    %6 = arith.addf %4, %5 : vector<256x64xf32>
    %cst_7 = arith.constant 0.000000e+00 : f32
    %7 = vector.broadcast %cst_7 : f32 to vector<256x64xf32>
    %8 = arith.maximumf %6, %7 : vector<256x64xf32>
    %c32 = arith.constant 32 : index
    %c0_8 = arith.constant 0 : index
    %9 = vector.load %arg3[%c32, %c0_8] : memref<200x128xf32, #tpu.memory_space<vmem>>, vector<64x32xf32>
    %c1 = arith.constant 1 : index
    %c0_9 = arith.constant 0 : index
    %10 = vector.load %arg4[%c1, %c0_9] : memref<8x128xf32, #tpu.memory_space<vmem>>, vector<1x32xf32>
    %cst_10 = arith.constant dense<0.000000e+00> : vector<256x32xf32>
    %11 = tpu.matmul %8, %9, %cst_10 {dimension_numbers = #tpu.dot_dimension_numbers<[1], [0], [0], [1], [0, 0, 1, 1], [], []>} : vector<256x64xf32>, vector<64x32xf32>, vector<256x32xf32> -> vector<256x32xf32>
    %12 = vector.broadcast %10 : vector<1x32xf32> to vector<256x32xf32>
    %13 = arith.addf %11, %12 : vector<256x32xf32>
    %cst_11 = arith.constant 0.000000e+00 : f32
    %14 = vector.broadcast %cst_11 : f32 to vector<256x32xf32>
    %15 = arith.maximumf %13, %14 : vector<256x32xf32>
    %c96 = arith.constant 96 : index
    %c0_12 = arith.constant 0 : index
    %16 = vector.load %arg3[%c96, %c0_12] : memref<200x128xf32, #tpu.memory_space<vmem>>, vector<32x32xf32>
    %c2 = arith.constant 2 : index
    %c0_13 = arith.constant 0 : index
    %17 = vector.load %arg4[%c2, %c0_13] : memref<8x128xf32, #tpu.memory_space<vmem>>, vector<1x32xf32>
    %cst_14 = arith.constant dense<0.000000e+00> : vector<256x32xf32>
    %18 = tpu.matmul %15, %16, %cst_14 {dimension_numbers = #tpu.dot_dimension_numbers<[1], [0], [0], [1], [0, 0, 1, 1], [], []>} : vector<256x32xf32>, vector<32x32xf32>, vector<256x32xf32> -> vector<256x32xf32>
    %19 = vector.broadcast %17 : vector<1x32xf32> to vector<256x32xf32>
    %20 = arith.addf %18, %19 : vector<256x32xf32>
    %21 = vector.extract_strided_slice %20 {offsets = [0, 0], sizes = [256, 2], strides = [1, 1]} : vector<256x32xf32> to vector<256x2xf32>
    %22 = vector.extract_strided_slice %20 {offsets = [0, 2], sizes = [256, 2], strides = [1, 1]} : vector<256x32xf32> to vector<256x2xf32>
    %cst_15 = arith.constant 5.000000e-01 : f32
    %23 = vector.broadcast %cst_15 : f32 to vector<256x2xf32>
    %24 = arith.mulf %23, %22 : vector<256x2xf32>
    %25 = math.exp %24 : vector<256x2xf32>
    %26 = arith.mulf %25, %1 : vector<256x2xf32>
    %27 = arith.addf %21, %26 : vector<256x2xf32>
    %c128 = arith.constant 128 : index
    %c0_16 = arith.constant 0 : index
    %28 = vector.load %arg3[%c128, %c0_16] : memref<200x128xf32, #tpu.memory_space<vmem>>, vector<2x64xf32>
    %c3 = arith.constant 3 : index
    %c0_17 = arith.constant 0 : index
    %29 = vector.load %arg4[%c3, %c0_17] : memref<8x128xf32, #tpu.memory_space<vmem>>, vector<1x64xf32>
    %cst_18 = arith.constant dense<0.000000e+00> : vector<256x64xf32>
    %30 = tpu.matmul %27, %28, %cst_18 {dimension_numbers = #tpu.dot_dimension_numbers<[1], [0], [0], [1], [0, 0, 1, 1], [], []>} : vector<256x2xf32>, vector<2x64xf32>, vector<256x64xf32> -> vector<256x64xf32>
    %31 = vector.broadcast %29 : vector<1x64xf32> to vector<256x64xf32>
    %32 = arith.addf %30, %31 : vector<256x64xf32>
    %cst_19 = arith.constant 0.000000e+00 : f32
    %33 = vector.broadcast %cst_19 : f32 to vector<256x64xf32>
    %34 = arith.maximumf %32, %33 : vector<256x64xf32>
    %c136 = arith.constant 136 : index
    %c0_20 = arith.constant 0 : index
    %35 = vector.load %arg3[%c136, %c0_20] : memref<200x128xf32, #tpu.memory_space<vmem>>, vector<64x32xf32>
    %c4 = arith.constant 4 : index
    %c0_21 = arith.constant 0 : index
    %36 = vector.load %arg4[%c4, %c0_21] : memref<8x128xf32, #tpu.memory_space<vmem>>, vector<1x32xf32>
    %cst_22 = arith.constant dense<0.000000e+00> : vector<256x32xf32>
    %37 = tpu.matmul %34, %35, %cst_22 {dimension_numbers = #tpu.dot_dimension_numbers<[1], [0], [0], [1], [0, 0, 1, 1], [], []>} : vector<256x64xf32>, vector<64x32xf32>, vector<256x32xf32> -> vector<256x32xf32>
    %38 = vector.broadcast %36 : vector<1x32xf32> to vector<256x32xf32>
    %39 = arith.addf %37, %38 : vector<256x32xf32>
    %cst_23 = arith.constant 0.000000e+00 : f32
    %40 = vector.broadcast %cst_23 : f32 to vector<256x32xf32>
    %41 = arith.maximumf %39, %40 : vector<256x32xf32>
    %c0_24 = arith.constant 0 : index
    %c0_25 = arith.constant 0 : index
    %42 = vector.load %arg5[%c0_24, %c0_25] : memref<256x128xf32, #tpu.memory_space<vmem>>, vector<256x32xf32>
    tpu.vector_store %arg5[%c0_24, %c0_25], %41 {strides = array<i32>} : memref<256x128xf32, #tpu.memory_space<vmem>>, vector<256x32xf32>,
    %c0_26 = arith.constant 0 : index
    %c32_27 = arith.constant 32 : index
    %43 = vector.load %arg5[%c0_26, %c32_27] : memref<256x128xf32, #tpu.memory_space<vmem>>, vector<256x32xf32>
    tpu.vector_store %arg5[%c0_26, %c32_27], %20 {strides = array<i32>} : memref<256x128xf32, #tpu.memory_space<vmem>>, vector<256x32xf32>,
    %cst_28 = arith.constant 0.000000e+00 : f32
    %44 = vector.broadcast %cst_28 : f32 to vector<256x64xf32>
    %c0_29 = arith.constant 0 : index
    %c64 = arith.constant 64 : index
    %45 = vector.load %arg5[%c0_29, %c64] : memref<256x128xf32, #tpu.memory_space<vmem>>, vector<256x64xf32>
    tpu.vector_store %arg5[%c0_29, %c64], %44 {strides = array<i32>} : memref<256x128xf32, #tpu.memory_space<vmem>>, vector<256x64xf32>,
    return
  }
  func.func @transform_0(%arg0: i32) -> (i32, i32) {
    %c0_i32 = arith.constant 0 : i32
    %c0_i32_0 = arith.constant 0 : i32
    return %arg0, %c0_i32 : i32, i32
  }
  func.func @transform_1(%arg0: i32) -> (i32, i32) {
    %c0_i32 = arith.constant 0 : i32
    %c0_i32_0 = arith.constant 0 : i32
    return %arg0, %c0_i32 : i32, i32
  }
  func.func @transform_2(%arg0: i32) -> (i32, i32) {
    %c0_i32 = arith.constant 0 : i32
    %c0_i32_0 = arith.constant 0 : i32
    %c0_i32_1 = arith.constant 0 : i32
    return %c0_i32, %c0_i32_0 : i32, i32
  }
  func.func @transform_3(%arg0: i32) -> (i32, i32) {
    %c0_i32 = arith.constant 0 : i32
    %c0_i32_0 = arith.constant 0 : i32
    %c0_i32_1 = arith.constant 0 : i32
    return %c0_i32, %c0_i32_0 : i32, i32
  }
  func.func @transform_4(%arg0: i32) -> (i32, i32) {
    %c0_i32 = arith.constant 0 : i32
    %c0_i32_0 = arith.constant 0 : i32
    return %arg0, %c0_i32 : i32, i32
  }
}

</mosaic_0001>

<llo_original>
// kernel: tpu_custom_call.1
$region0: #{tpu_custom_call.1}
  #allocation0 [shape = 'u32[]', space=smem, size = 0x4, offset = 0x4, fixed_abs, tag = 'smem constant byte address 0x4 - core index']
  #allocation1 [shape = 'u32[144,128]{1,0:T(1,128)}', space=vmem, size = 0x12000, scoped, tag = 'internal scratch']
  %s0 = inlined_call_operand.vmem [shape: f32[512,30], index: 0, kind: input, shape index: {}]
  %s1 = inlined_call_operand.vmem [shape: f32[512,2], index: 1, kind: input, shape index: {}]
  %s2 = inlined_call_operand.vmem [shape: f32[200,128], index: 2, kind: input, shape index: {}]
  %s3 = inlined_call_operand.vmem [shape: f32[8,128], index: 3, kind: input, shape index: {}]
  %s4 = inlined_call_operand.hbm [shape: f32[512,128], index: 4, kind: output, shape index: {}]
  %s5 = sld [smem:[#allocation0]]
  $region49: #{tpu_custom_call.1} parent=0
    _
  %s7 = ssub.s32 1, %s5
  %s8 = scalar_select 0, %s7, %s5
  $region1: #{tpu_custom_call.1} parent=0
    #allocation2 [shape = 'u8[262144]{0}', space=vmem, size = 0x40000, scoped, tag = 'output window, operand 0']
    #allocation3 [shape = 's32[2]{0}', space=sflag, size = 0x8, scoped, tag = 'scoped memory for tpu_custom_call.1']
    %9 = vsyncpa [#allocation3], 0
    %s10 = scalar_lea.sflag [#allocation3], 1
    %11 = vsyncpa %s10, 0
    loop: start=0, step=1, limit=4
    $region2: #{tpu_custom_call.1} parent=1 // loop_pre_header
      _
    $region3: #{tpu_custom_call.1} parent=1 // loop_header
      %s13 = sphi 0, %s17
      %p14 = scmp.ge.s32.totalorder %s13, 4
      %s23 = sphi 0, %s25
      %s26 = sphi 0, %s23
      %s27 = sphi 0, %s26
      %s43 = sphi 0, %s27
      %s49 = sphi 0, %s51
      %s52 = sphi 0, %s49
      %s53 = sphi 0, %s52
      %s69 = sphi 0, %s53
      %s73 = sphi 0, %s73
      %s75 = sphi 0, %s73
      %s76 = sphi 0, %s75
      %s90 = sphi 0, %s76
      %s94 = sphi 0, %s94
      %s96 = sphi 0, %s94
      %s97 = sphi 0, %s96
      %s111 = sphi 0, %s97
      %s117 = sphi 0, %s119
      %s120 = sphi 0, %s117
      %s121 = sphi 0, %s120
      %s137 = sphi 0, %s121
    $region4: #{tpu_custom_call.1} parent=1 // loop_header_branch
      %16 = sbr.rel (%p14) target = $region8
    $region5: #{tpu_custom_call.1} parent=1 // loop_body
      %s18 = ssub.s32 %s13, 1
      %s19 = ssub.s32 %s13, 2
      %s20 = sadd.s32 %s13, 1
      %s21 = ssub.s32 %s13, %s20
      %p22 = scmp.eq.s32.totalorder %s21, 0
      %s24 = sadd.s32 %s23, 1
      %s25 = scalar_select %p22, %s23, %s24
      %p28 = pneg %p22
      %p29 = scmp.eq.s32.totalorder %s13, 1
      %p30 = por %p28, %p29
      %p31 = scmp.ne.s32.totalorder %s23, %s26
      %p32 = scmp.eq.s32.totalorder %s13, 0
      %p33 = por %p31, %p32
      %p34 = scmp.ne.s32.totalorder %s23, %s26
      %p35 = scmp.eq.s32.totalorder %s18, 1
      %p36 = por %p34, %p35
      %p37 = scmp.ne.s32.totalorder %s26, %s27
      %p38 = scmp.eq.s32.totalorder %s18, 0
      %p39 = por %p37, %p38
      %p40 = scmp.ne.s32.totalorder %s26, %s27
      %p41 = scmp.eq.s32.totalorder %s19, 1
      %p42 = por %p40, %p41
      %p44 = scmp.ne.s32.totalorder %s27, %s43
      %p45 = scmp.eq.s32.totalorder %s19, 0
      %p46 = por %p44, %p45
      %s47 = ssub.s32 %s13, %s20
      %p48 = scmp.eq.s32.totalorder %s47, 0
      %s50 = sadd.s32 %s49, 1
      %s51 = scalar_select %p48, %s49, %s50
      %p54 = pneg %p48
      %p55 = scmp.eq.s32.totalorder %s13, 1
      %p56 = por %p54, %p55
      %p57 = scmp.ne.s32.totalorder %s49, %s52
      %p58 = scmp.eq.s32.totalorder %s13, 0
      %p59 = por %p57, %p58
      %p60 = scmp.ne.s32.totalorder %s49, %s52
      %p61 = scmp.eq.s32.totalorder %s18, 1
      %p62 = por %p60, %p61
      %p63 = scmp.ne.s32.totalorder %s52, %s53
      %p64 = scmp.eq.s32.totalorder %s18, 0
      %p65 = por %p63, %p64
      %p66 = scmp.ne.s32.totalorder %s52, %s53
      %p67 = scmp.eq.s32.totalorder %s19, 1
      %p68 = por %p66, %p67
      %p70 = scmp.ne.s32.totalorder %s53, %s69
      %p71 = scmp.eq.s32.totalorder %s19, 0
      %p72 = por %p70, %p71
      %s74 = sadd.s32 %s73, 1
      %p77 = scmp.eq.s32.totalorder %s13, 1
      %p78 = scmp.ne.s32.totalorder %s73, %s75
      %p79 = scmp.eq.s32.totalorder %s13, 0
      %p80 = por %p78, %p79
      %p81 = scmp.ne.s32.totalorder %s73, %s75
      %p82 = scmp.eq.s32.totalorder %s18, 1
      %p83 = por %p81, %p82
      %p84 = scmp.ne.s32.totalorder %s75, %s76
      %p85 = scmp.eq.s32.totalorder %s18, 0
      %p86 = por %p84, %p85
      %p87 = scmp.ne.s32.totalorder %s75, %s76
      %p88 = scmp.eq.s32.totalorder %s19, 1
      %p89 = por %p87, %p88
      %p91 = scmp.ne.s32.totalorder %s76, %s90
      %p92 = scmp.eq.s32.totalorder %s19, 0
      %p93 = por %p91, %p92
      %s95 = sadd.s32 %s94, 1
      %p98 = scmp.eq.s32.totalorder %s13, 1
      %p99 = scmp.ne.s32.totalorder %s94, %s96
      %p100 = scmp.eq.s32.totalorder %s13, 0
      %p101 = por %p99, %p100
      %p102 = scmp.ne.s32.totalorder %s94, %s96
      %p103 = scmp.eq.s32.totalorder %s18, 1
      %p104 = por %p102, %p103
      %p105 = scmp.ne.s32.totalorder %s96, %s97
      %p106 = scmp.eq.s32.totalorder %s18, 0
      %p107 = por %p105, %p106
      %p108 = scmp.ne.s32.totalorder %s96, %s97
      %p109 = scmp.eq.s32.totalorder %s19, 1
      %p110 = por %p108, %p109
      %p112 = scmp.ne.s32.totalorder %s97, %s111
      %p113 = scmp.eq.s32.totalorder %s19, 0
      %p114 = por %p112, %p113
      %s115 = ssub.s32 %s13, %s20
      %p116 = scmp.eq.s32.totalorder %s115, 0
      %s118 = sadd.s32 %s117, 1
      %s119 = scalar_select %p116, %s117, %s118
      %p122 = pneg %p116
      %p123 = scmp.eq.s32.totalorder %s13, 1
      %p124 = por %p122, %p123
      %p125 = scmp.ne.s32.totalorder %s117, %s120
      %p126 = scmp.eq.s32.totalorder %s13, 0
      %p127 = por %p125, %p126
      %p128 = scmp.ne.s32.totalorder %s117, %s120
      %p129 = scmp.eq.s32.totalorder %s18, 1
      %p130 = por %p128, %p129
      %p131 = scmp.ne.s32.totalorder %s120, %s121
      %p132 = scmp.eq.s32.totalorder %s18, 0
      %p133 = por %p131, %p132
      %p134 = scmp.ne.s32.totalorder %s120, %s121
      %p135 = scmp.eq.s32.totalorder %s19, 1
      %p136 = por %p134, %p135
      %p138 = scmp.ne.s32.totalorder %s121, %s137
      %p139 = scmp.eq.s32.totalorder %s19, 0
      %p140 = por %p138, %p139
      %p141 = scmp.le.s32.totalorder 1, %s13
      %p142 = scmp.lt.s32.totalorder %s13, 3
      %p143 = pnand %p141, %p142
      %p144 = pneg %p143
      // Predicated region
      $region9: #{tpu_custom_call.1} parent=5 // pred_check
        _
      $region10: #{tpu_custom_call.1} parent=5 // pred_check_branch
        %146 = sbr.rel (%p143) target = $region12
      $region11: #{tpu_custom_call.1} parent=5 // pred_region
        %s147 = ssub.s32 %s13, 1
        // Predicated region
        $region13: #{tpu_custom_call.1} parent=11 // pred_check
          %p148 = pneg %p86
        $region14: #{tpu_custom_call.1} parent=11 // pred_check_branch
          %150 = sbr.rel (%p148) target = $region16
        $region15: #{tpu_custom_call.1} parent=11 // pred_region
          _
        $region16: #{tpu_custom_call.1} parent=11 // pred_fallthru
          _
        // Predicated region
        $region17: #{tpu_custom_call.1} parent=11 // pred_check
          %p151 = pneg %p107
        $region18: #{tpu_custom_call.1} parent=11 // pred_check_branch
          %153 = sbr.rel (%p151) target = $region20
        $region19: #{tpu_custom_call.1} parent=11 // pred_region
          _
        $region20: #{tpu_custom_call.1} parent=11 // pred_fallthru
          _
      $region12: #{tpu_custom_call.1} parent=5 // pred_fallthru
        _
      %p154 = scmp.lt.s32.totalorder %s13, 2
      // Predicated region
      $region21: #{tpu_custom_call.1} parent=5 // pred_check
        %p155 = pneg %p154
      $region22: #{tpu_custom_call.1} parent=5 // pred_check_branch
        %157 = sbr.rel (%p155) target = $region24
      $region23: #{tpu_custom_call.1} parent=5 // pred_region
        // Predicated region
        $region25: #{tpu_custom_call.1} parent=23 // pred_check
          %p158 = pneg %p33
        $region26: #{tpu_custom_call.1} parent=23 // pred_check_branch
          %160 = sbr.rel (%p158) target = $region28
        $region27: #{tpu_custom_call.1} parent=23 // pred_region
          %s161 = smul.u32 32, %s13
          %p162 = scmp.lt.s32.totalorder %s161, 63
          %s163 = scalar_select %p162, %s161, 63
          %s164 = smul.addr %s163, 8
          %s165 = scalar_lea.vmem %s0, %s164
          %s166 = smul.u32 32, %s13
        $region28: #{tpu_custom_call.1} parent=23 // pred_fallthru
          _
        // Predicated region
        $region29: #{tpu_custom_call.1} parent=23 // pred_check
          %p167 = pneg %p59
        $region30: #{tpu_custom_call.1} parent=23 // pred_check_branch
          %169 = sbr.rel (%p167) target = $region32
        $region31: #{tpu_custom_call.1} parent=23 // pred_region
          %s170 = smul.u32 32, %s13
          %p171 = scmp.lt.s32.totalorder %s170, 63
          %s172 = scalar_select %p171, %s170, 63
          %s173 = smul.addr %s172, 8
          %s174 = scalar_lea.vmem %s1, %s173
          %s175 = smul.u32 32, %s13
        $region32: #{tpu_custom_call.1} parent=23 // pred_fallthru
          _
      $region24: #{tpu_custom_call.1} parent=5 // pred_fallthru
        _
      %p176 = scmp.le.s32.totalorder 1, %s13
      %p177 = scmp.lt.s32.totalorder %s13, 3
      %p178 = pnand %p176, %p177
      %p179 = pneg %p178
      // Predicated region
      $region33: #{tpu_custom_call.1} parent=5 // pred_check
        _
      $region34: #{tpu_custom_call.1} parent=5 // pred_check_branch
        %181 = sbr.rel (%p178) target = $region36
      $region35: #{tpu_custom_call.1} parent=5 // pred_region
        %s182 = ssub.s32 %s13, 1
        %s183 = smul.u32 32, %s18
        %p184 = scmp.lt.s32.totalorder %s183, 63
        %s185 = scalar_select %p184, %s183, 63
        %s186 = smul.addr %s185, 8
        %s187 = scalar_lea.vmem %s0, %s186
        %p188 = pneg %p39
        %p189 = pneg %p36
        %s190 = smul.u32 32, %s18
        %p191 = scmp.lt.s32.totalorder %s190, 63
        %s192 = scalar_select %p191, %s190, 63
        %s193 = smul.addr %s192, 8
        %s194 = scalar_lea.vmem %s1, %s193
        %p195 = pneg %p65
        %p196 = pneg %p62
        %p197 = pneg %p86
        %p198 = pneg %p83
        %p199 = pneg %p107
        %p200 = pneg %p104
        %p201 = pneg %p133
        %p202 = pneg %p130
        %s203 = sand.u32 %s120, 1
        %s204 = scalar_lea.sflag [#allocation3], %s203
        %s205 = sand.u32 %s120, 1
        %s206 = smul.addr %s205, 256
        %s207 = scalar_lea.vmem [#allocation2], %s206
        %s208 = smul.u32 32, %s18
        %p209 = scmp.lt.s32.totalorder %s208, 63
        %s210 = scalar_select %p209, %s208, 63
        %s211 = smul.addr %s210, 8
        %s212 = scalar_lea.vmem %s0, %s211
        %s213 = smul.u32 32, %s18
        %s214 = smul.u32 32, %s18
        %p215 = scmp.lt.s32.totalorder %s214, 63
        %s216 = scalar_select %p215, %s214, 63
        %s217 = smul.addr %s216, 8
        %s218 = scalar_lea.vmem %s1, %s217
        %s219 = smul.u32 32, %s18
        %s220 = smul.u32 32, %s18
        %v221 = vld [vmem:[%s212] sm:$0xff]
        %v222 = vld [vmem:[%s212 + $0x8] sm:$0xff]
        %v223 = vld [vmem:[%s212 + $0x10] sm:$0xff]
        %v224 = vld [vmem:[%s212 + $0x18] sm:$0xff]
        %v225 = vld [vmem:[%s212 + $0x20] sm:$0xff]
        %v226 = vld [vmem:[%s212 + $0x28] sm:$0xff]
        %v227 = vld [vmem:[%s212 + $0x30] sm:$0xff]
        %v228 = vld [vmem:[%s212 + $0x38] sm:$0xff]
        %v229 = vld [vmem:[%s212 + $0x40] sm:$0xff]
        %v230 = vld [vmem:[%s212 + $0x48] sm:$0xff]
        %v231 = vld [vmem:[%s212 + $0x50] sm:$0xff]
        %v232 = vld [vmem:[%s212 + $0x58] sm:$0xff]
        %v233 = vld [vmem:[%s212 + $0x60] sm:$0xff]
        %v234 = vld [vmem:[%s212 + $0x68] sm:$0xff]
        %v235 = vld [vmem:[%s212 + $0x70] sm:$0xff]
        %v236 = vld [vmem:[%s212 + $0x78] sm:$0xff]
        %v237 = vld [vmem:[%s212 + $0x80] sm:$0xff]
        %v238 = vld [vmem:[%s212 + $0x88] sm:$0xff]
        %v239 = vld [vmem:[%s212 + $0x90] sm:$0xff]
        %v240 = vld [vmem:[%s212 + $0x98] sm:$0xff]
        %v241 = vld [vmem:[%s212 + $0xa0] sm:$0xff]
        %v242 = vld [vmem:[%s212 + $0xa8] sm:$0xff]
        %v243 = vld [vmem:[%s212 + $0xb0] sm:$0xff]
        %v244 = vld [vmem:[%s212 + $0xb8] sm:$0xff]
        %v245 = vld [vmem:[%s212 + $0xc0] sm:$0xff]
        %v246 = vld [vmem:[%s212 + $0xc8] sm:$0xff]
        %v247 = vld [vmem:[%s212 + $0xd0] sm:$0xff]
        %v248 = vld [vmem:[%s212 + $0xd8] sm:$0xff]
        %v249 = vld [vmem:[%s212 + $0xe0] sm:$0xff]
        %v250 = vld [vmem:[%s212 + $0xe8] sm:$0xff]
        %v251 = vld [vmem:[%s212 + $0xf0] sm:$0xff]
        %v252 = vld [vmem:[%s212 + $0xf8] sm:$0xff]
        %v253 = vld [vmem:[%s218] sm:$0xff]
        %v254 = vld [vmem:[%s218 + $0x8] sm:$0xff]
        %v255 = vld [vmem:[%s218 + $0x10] sm:$0xff]
        %v256 = vld [vmem:[%s218 + $0x18] sm:$0xff]
        %v257 = vld [vmem:[%s218 + $0x20] sm:$0xff]
        %v258 = vld [vmem:[%s218 + $0x28] sm:$0xff]
        %v259 = vld [vmem:[%s218 + $0x30] sm:$0xff]
        %v260 = vld [vmem:[%s218 + $0x38] sm:$0xff]
        %v261 = vld [vmem:[%s218 + $0x40] sm:$0xff]
        %v262 = vld [vmem:[%s218 + $0x48] sm:$0xff]
        %v263 = vld [vmem:[%s218 + $0x50] sm:$0xff]
        %v264 = vld [vmem:[%s218 + $0x58] sm:$0xff]
        %v265 = vld [vmem:[%s218 + $0x60] sm:$0xff]
        %v266 = vld [vmem:[%s218 + $0x68] sm:$0xff]
        %v267 = vld [vmem:[%s218 + $0x70] sm:$0xff]
        %v268 = vld [vmem:[%s218 + $0x78] sm:$0xff]
        %v269 = vld [vmem:[%s218 + $0x80] sm:$0xff]
        %v270 = vld [vmem:[%s218 + $0x88] sm:$0xff]
        %v271 = vld [vmem:[%s218 + $0x90] sm:$0xff]
        %v272 = vld [vmem:[%s218 + $0x98] sm:$0xff]
        %v273 = vld [vmem:[%s218 + $0xa0] sm:$0xff]
        %v274 = vld [vmem:[%s218 + $0xa8] sm:$0xff]
        %v275 = vld [vmem:[%s218 + $0xb0] sm:$0xff]
        %v276 = vld [vmem:[%s218 + $0xb8] sm:$0xff]
        %v277 = vld [vmem:[%s218 + $0xc0] sm:$0xff]
        %v278 = vld [vmem:[%s218 + $0xc8] sm:$0xff]
        %v279 = vld [vmem:[%s218 + $0xd0] sm:$0xff]
        %v280 = vld [vmem:[%s218 + $0xd8] sm:$0xff]
        %v281 = vld [vmem:[%s218 + $0xe0] sm:$0xff]
        %v282 = vld [vmem:[%s218 + $0xe8] sm:$0xff]
        %v283 = vld [vmem:[%s218 + $0xf0] sm:$0xff]
        %v284 = vld [vmem:[%s218 + $0xf8] sm:$0xff]
        %v285 = vld [vmem:[%s2] sm:$0xff]
        %v286 = vld [vmem:[%s2 + $0x8] sm:$0xff]
        %v287 = vld [vmem:[%s2 + $0x10] sm:$0xff]
        %v288 = vld [vmem:[%s2 + $0x18] sm:$0x3f]
        %v289 = vld [vmem:[%s3] sm:$0x1]
        %v290 = vlaneseq
        %v291 = vshrl.u32 %v290, 7
        %v292 = vsub.s32 0, %v291
        %v293 = vrot.slane %v289, %v292
        %vm294 = vcmask 244736
        %v296 = vsel %vm294, %v221, 0
        %v299 = vsel %vm294, %v222, 0
        %v302 = vsel %vm294, %v223, 0
        %v305 = vsel %vm294, %v224, 0
        %v308 = vsel %vm294, %v225, 0
        %v311 = vsel %vm294, %v226, 0
        %v314 = vsel %vm294, %v227, 0
        %v317 = vsel %vm294, %v228, 0
        %v320 = vsel %vm294, %v229, 0
        %v323 = vsel %vm294, %v230, 0
        %v326 = vsel %vm294, %v231, 0
        %v329 = vsel %vm294, %v232, 0
        %v332 = vsel %vm294, %v233, 0
        %v335 = vsel %vm294, %v234, 0
        %v338 = vsel %vm294, %v235, 0
        %v341 = vsel %vm294, %v236, 0
        %v344 = vsel %vm294, %v237, 0
        %v347 = vsel %vm294, %v238, 0
        %v350 = vsel %vm294, %v239, 0
        %v353 = vsel %vm294, %v240, 0
        %v356 = vsel %vm294, %v241, 0
        %v359 = vsel %vm294, %v242, 0
        %v362 = vsel %vm294, %v243, 0
        %v365 = vsel %vm294, %v244, 0
        %v368 = vsel %vm294, %v245, 0
        %v371 = vsel %vm294, %v246, 0
        %v374 = vsel %vm294, %v247, 0
        %v377 = vsel %vm294, %v248, 0
        %v380 = vsel %vm294, %v249, 0
        %v383 = vsel %vm294, %v250, 0
        %v386 = vsel %vm294, %v251, 0
        %v389 = vsel %vm294, %v252, 0
        %vm391 = vcmask 1045504
        %v393 = vsel %vm391, %v288, 0
        %395 = vmatprep.subr.mxu0 0.0
        %396 = vmatpush1.msra.mxu0 %v285
        %397 = vmatprep.subr.mxu0 0.0
        %398 = vmatpush1.msra.mxu0 %v286
        %399 = vmatprep.subr.mxu0 0.0
        %400 = vmatpush1.msra.mxu0 %v287
        %401 = vmatprep.subr.mxu0 0.0
        %402 = vmatpush1.msra.mxu0 %v393
        %403 = vmatprep.subr.mxu0 0.0
        %404 = vmatpush1.msra.mxu0 0.0
        %405 = vmatprep.subr.mxu0 0.0
        %406 = vmatpush1.msra.mxu0 0.0
        %407 = vmatprep.subr.mxu0 0.0
        %408 = vmatpush1.msra.mxu0 0.0
        %409 = vmatprep.subr.mxu0 0.0
        %410 = vmatpush1.msra.mxu0 0.0
        %411 = vmatprep.subr.mxu0 0.0
        %412 = vmatpush1.msra.mxu0 0.0
        %413 = vmatprep.subr.mxu0 0.0
        %414 = vmatpush1.msra.mxu0 0.0
        %415 = vmatprep.subr.mxu0 0.0
        %416 = vmatpush1.msra.mxu0 0.0
        %417 = vmatprep.subr.mxu0 0.0
        %418 = vmatpush1.msra.mxu0 0.0
        %419 = vmatprep.subr.mxu0 0.0
        %420 = vmatpush1.msra.mxu0 0.0
        %421 = vmatprep.subr.mxu0 0.0
        %422 = vmatpush1.msra.mxu0 0.0
        %423 = vmatprep.subr.mxu0 0.0
        %424 = vmatpush1.msra.mxu0 0.0
        %425 = vmatprep.subr.mxu0 0.0
        %426 = vmatpush1.msra.mxu0 0.0
        %427 = vmatprep.subr.mxu0 0.0
        %428 = vmatpush1.msra.mxu0 0.0
        %429 = vmatprep.subr.mxu0 0.0
        %430 = vmatpush1.msra.mxu0 0.0
        %431 = vmatprep.subr.mxu0 0.0
        %432 = vmatpush1.msra.mxu0 0.0
        %433 = vmatprep.subr.mxu0 0.0
        %434 = vmatpush1.msra.mxu0 0.0
        %435 = vmatprep.subr.mxu0 0.0
        %436 = vmatpush1.msra.mxu0 0.0
        %437 = vmatprep.subr.mxu0 0.0
        %438 = vmatpush1.msra.mxu0 0.0
        %439 = vmatprep.subr.mxu0 0.0
        %440 = vmatpush1.msra.mxu0 0.0
        %441 = vmatprep.subr.mxu0 0.0
        %442 = vmatpush1.msra.mxu0 0.0
        %443 = vmatprep.subr.mxu0 0.0
        %444 = vmatpush1.msra.mxu0 0.0
        %445 = vmatprep.subr.mxu0 0.0
        %446 = vmatpush1.msra.mxu0 0.0
        %447 = vmatprep.subr.mxu0 0.0
        %448 = vmatpush1.msra.mxu0 0.0
        %449 = vmatprep.subr.mxu0 0.0
        %450 = vmatpush1.msra.mxu0 0.0
        %451 = vmatprep.subr.mxu0 0.0
        %452 = vmatpush1.msra.mxu0 0.0
        %453 = vmatprep.subr.mxu0 0.0
        %454 = vmatpush1.msra.mxu0 0.0
        %455 = vmatprep.subr.mxu0 0.0
        %456 = vmatpush1.msra.mxu0 0.0
        %457 = vmatprep.subr.mxu0 0.0
        %458 = vmatpush1.msra.mxu0 0.0
        %459 = vmatprep.mubr.f32.mxu0 0.0
        %460 = vmatmul.mubr.f32.gmra.mrb[0].mxu0 %v296
        %v461 = vpop.f32.mrb[0].mxu0
        %v462 = vadd.f32 %v293, %v461
        %v463 = vpop.f32.mrb[0].mxu0
        %464 = vmatprep.mubr.f32.mxu0 0.0
        %465 = vmatmul.mubr.f32.gmra.mrb[0].mxu0 %v299
        %v466 = vpop.f32.mrb[0].mxu0
        %v467 = vadd.f32 %v293, %v466
        %v468 = vpop.f32.mrb[0].mxu0
        %469 = vmatprep.mubr.f32.mxu0 0.0
        %470 = vmatmul.mubr.f32.gmra.mrb[0].mxu0 %v302
        %v471 = vpop.f32.mrb[0].mxu0
        %v472 = vadd.f32 %v293, %v471
        %v473 = vpop.f32.mrb[0].mxu0
        %474 = vmatprep.mubr.f32.mxu0 0.0
        %475 = vmatmul.mubr.f32.gmra.mrb[0].mxu0 %v305
        %v476 = vpop.f32.mrb[0].mxu0
        %v477 = vadd.f32 %v293, %v476
        %v478 = vpop.f32.mrb[0].mxu0
        %479 = vmatprep.mubr.f32.mxu0 0.0
        %480 = vmatmul.mubr.f32.gmra.mrb[0].mxu0 %v308
        %v481 = vpop.f32.mrb[0].mxu0
        %v482 = vadd.f32 %v293, %v481
        %v483 = vpop.f32.mrb[0].mxu0
        %484 = vmatprep.mubr.f32.mxu0 0.0
        %485 = vmatmul.mubr.f32.gmra.mrb[0].mxu0 %v311
        %v486 = vpop.f32.mrb[0].mxu0
        %v487 = vadd.f32 %v293, %v486
        %v488 = vpop.f32.mrb[0].mxu0
        %489 = vmatprep.mubr.f32.mxu0 0.0
        %490 = vmatmul.mubr.f32.gmra.mrb[0].mxu0 %v314
        %v491 = vpop.f32.mrb[0].mxu0
        %v492 = vadd.f32 %v293, %v491
        %v493 = vpop.f32.mrb[0].mxu0
        %494 = vmatprep.mubr.f32.mxu0 0.0
        %495 = vmatmul.mubr.f32.gmra.mrb[0].mxu0 %v317
        %v496 = vpop.f32.mrb[0].mxu0
        %v497 = vadd.f32 %v293, %v496
        %v498 = vpop.f32.mrb[0].mxu0
        %499 = vmatprep.mubr.f32.mxu0 0.0
        %500 = vmatmul.mubr.f32.gmra.mrb[0].mxu0 %v320
        %v501 = vpop.f32.mrb[0].mxu0
        %v502 = vadd.f32 %v293, %v501
        %v503 = vpop.f32.mrb[0].mxu0
        %504 = vmatprep.mubr.f32.mxu0 0.0
        %505 = vmatmul.mubr.f32.gmra.mrb[0].mxu0 %v323
        %v506 = vpop.f32.mrb[0].mxu0
        %v507 = vadd.f32 %v293, %v506
        %v508 = vpop.f32.mrb[0].mxu0
        %509 = vmatprep.mubr.f32.mxu0 0.0
        %510 = vmatmul.mubr.f32.gmra.mrb[0].mxu0 %v326
        %v511 = vpop.f32.mrb[0].mxu0
        %v512 = vadd.f32 %v293, %v511
        %v513 = vpop.f32.mrb[0].mxu0
        %514 = vmatprep.mubr.f32.mxu0 0.0
        %515 = vmatmul.mubr.f32.gmra.mrb[0].mxu0 %v329
        %v516 = vpop.f32.mrb[0].mxu0
        %v517 = vadd.f32 %v293, %v516
        %v518 = vpop.f32.mrb[0].mxu0
        %519 = vmatprep.mubr.f32.mxu0 0.0
        %520 = vmatmul.mubr.f32.gmra.mrb[0].mxu0 %v332
        %v521 = vpop.f32.mrb[0].mxu0
        %v522 = vadd.f32 %v293, %v521
        %v523 = vpop.f32.mrb[0].mxu0
        %524 = vmatprep.mubr.f32.mxu0 0.0
        %525 = vmatmul.mubr.f32.gmra.mrb[0].mxu0 %v335
        %v526 = vpop.f32.mrb[0].mxu0
        %v527 = vadd.f32 %v293, %v526
        %v528 = vpop.f32.mrb[0].mxu0
        %529 = vmatprep.mubr.f32.mxu0 0.0
        %530 = vmatmul.mubr.f32.gmra.mrb[0].mxu0 %v338
        %v531 = vpop.f32.mrb[0].mxu0
        %v532 = vadd.f32 %v293, %v531
        %v533 = vpop.f32.mrb[0].mxu0
        %534 = vmatprep.mubr.f32.mxu0 0.0
        %535 = vmatmul.mubr.f32.gmra.mrb[0].mxu0 %v341
        %v536 = vpop.f32.mrb[0].mxu0
        %v537 = vadd.f32 %v293, %v536
        %v538 = vpop.f32.mrb[0].mxu0
        %539 = vmatprep.mubr.f32.mxu0 0.0
        %540 = vmatmul.mubr.f32.gmra.mrb[0].mxu0 %v344
        %v541 = vpop.f32.mrb[0].mxu0
        %v542 = vadd.f32 %v293, %v541
        %v543 = vpop.f32.mrb[0].mxu0
        %544 = vmatprep.mubr.f32.mxu0 0.0
        %545 = vmatmul.mubr.f32.gmra.mrb[0].mxu0 %v347
        %v546 = vpop.f32.mrb[0].mxu0
        %v547 = vadd.f32 %v293, %v546
        %v548 = vpop.f32.mrb[0].mxu0
        %549 = vmatprep.mubr.f32.mxu0 0.0
        %550 = vmatmul.mubr.f32.gmra.mrb[0].mxu0 %v350
        %v551 = vpop.f32.mrb[0].mxu0
        %v552 = vadd.f32 %v293, %v551
        %v553 = vpop.f32.mrb[0].mxu0
        %554 = vmatprep.mubr.f32.mxu0 0.0
        %555 = vmatmul.mubr.f32.gmra.mrb[0].mxu0 %v353
        %v556 = vpop.f32.mrb[0].mxu0
        %v557 = vadd.f32 %v293, %v556
        %v558 = vpop.f32.mrb[0].mxu0
        %559 = vmatprep.mubr.f32.mxu0 0.0
        %560 = vmatmul.mubr.f32.gmra.mrb[0].mxu0 %v356
        %v561 = vpop.f32.mrb[0].mxu0
        %v562 = vadd.f32 %v293, %v561
        %v563 = vpop.f32.mrb[0].mxu0
        %564 = vmatprep.mubr.f32.mxu0 0.0
        %565 = vmatmul.mubr.f32.gmra.mrb[0].mxu0 %v359
        %v566 = vpop.f32.mrb[0].mxu0
        %v567 = vadd.f32 %v293, %v566
        %v568 = vpop.f32.mrb[0].mxu0
        %569 = vmatprep.mubr.f32.mxu0 0.0
        %570 = vmatmul.mubr.f32.gmra.mrb[0].mxu0 %v362
        %v571 = vpop.f32.mrb[0].mxu0
        %v572 = vadd.f32 %v293, %v571
        %v573 = vpop.f32.mrb[0].mxu0
        %574 = vmatprep.mubr.f32.mxu0 0.0
        %575 = vmatmul.mubr.f32.gmra.mrb[0].mxu0 %v365
        %v576 = vpop.f32.mrb[0].mxu0
        %v577 = vadd.f32 %v293, %v576
        %v578 = vpop.f32.mrb[0].mxu0
        %579 = vmatprep.mubr.f32.mxu0 0.0
        %580 = vmatmul.mubr.f32.gmra.mrb[0].mxu0 %v368
        %v581 = vpop.f32.mrb[0].mxu0
        %v582 = vadd.f32 %v293, %v581
        %v583 = vpop.f32.mrb[0].mxu0
        %584 = vmatprep.mubr.f32.mxu0 0.0
        %585 = vmatmul.mubr.f32.gmra.mrb[0].mxu0 %v371
        %v586 = vpop.f32.mrb[0].mxu0
        %v587 = vadd.f32 %v293, %v586
        %v588 = vpop.f32.mrb[0].mxu0
        %589 = vmatprep.mubr.f32.mxu0 0.0
        %590 = vmatmul.mubr.f32.gmra.mrb[0].mxu0 %v374
        %v591 = vpop.f32.mrb[0].mxu0
        %v592 = vadd.f32 %v293, %v591
        %v593 = vpop.f32.mrb[0].mxu0
        %594 = vmatprep.mubr.f32.mxu0 0.0
        %595 = vmatmul.mubr.f32.gmra.mrb[0].mxu0 %v377
        %v596 = vpop.f32.mrb[0].mxu0
        %v597 = vadd.f32 %v293, %v596
        %v598 = vpop.f32.mrb[0].mxu0
        %599 = vmatprep.mubr.f32.mxu0 0.0
        %600 = vmatmul.mubr.f32.gmra.mrb[0].mxu0 %v380
        %v601 = vpop.f32.mrb[0].mxu0
        %v602 = vadd.f32 %v293, %v601
        %v603 = vpop.f32.mrb[0].mxu0
        %604 = vmatprep.mubr.f32.mxu0 0.0
        %605 = vmatmul.mubr.f32.gmra.mrb[0].mxu0 %v383
        %v606 = vpop.f32.mrb[0].mxu0
        %v607 = vadd.f32 %v293, %v606
        %v608 = vpop.f32.mrb[0].mxu0
        %609 = vmatprep.mubr.f32.mxu0 0.0
        %610 = vmatmul.mubr.f32.gmra.mrb[0].mxu0 %v386
        %v611 = vpop.f32.mrb[0].mxu0
        %v612 = vadd.f32 %v293, %v611
        %v613 = vpop.f32.mrb[0].mxu0
        %614 = vmatprep.mubr.f32.mxu0 0.0
        %615 = vmatmul.mubr.f32.gmra.mrb[0].mxu0 %v389
        %v616 = vpop.f32.mrb[0].mxu0
        %v617 = vadd.f32 %v293, %v616
        %v618 = vpop.f32.mrb[0].mxu0
        %619 = vdwg.mxu0
        %v620 = vmax.f32 %v462, 0.0
        %v621 = vmax.f32 %v467, 0.0
        %v622 = vmax.f32 %v472, 0.0
        %v623 = vmax.f32 %v477, 0.0
        %v624 = vmax.f32 %v482, 0.0
        %v625 = vmax.f32 %v487, 0.0
        %v626 = vmax.f32 %v492, 0.0
        %v627 = vmax.f32 %v497, 0.0
        %v628 = vmax.f32 %v502, 0.0
        %v629 = vmax.f32 %v507, 0.0
        %v630 = vmax.f32 %v512, 0.0
        %v631 = vmax.f32 %v517, 0.0
        %v632 = vmax.f32 %v522, 0.0
        %v633 = vmax.f32 %v527, 0.0
        %v634 = vmax.f32 %v532, 0.0
        %v635 = vmax.f32 %v537, 0.0
        %v636 = vmax.f32 %v542, 0.0
        %v637 = vmax.f32 %v547, 0.0
        %v638 = vmax.f32 %v552, 0.0
        %v639 = vmax.f32 %v557, 0.0
        %v640 = vmax.f32 %v562, 0.0
        %v641 = vmax.f32 %v567, 0.0
        %v642 = vmax.f32 %v572, 0.0
        %v643 = vmax.f32 %v577, 0.0
        %v644 = vmax.f32 %v582, 0.0
        %v645 = vmax.f32 %v587, 0.0
        %v646 = vmax.f32 %v592, 0.0
        %v647 = vmax.f32 %v597, 0.0
        %v648 = vmax.f32 %v602, 0.0
        %v649 = vmax.f32 %v607, 0.0
        %v650 = vmax.f32 %v612, 0.0
        %v651 = vmax.f32 %v617, 0.0
        %v652 = vld [vmem:[%s2 + $0x20] sm:$0xff]
        %v653 = vld [vmem:[%s2 + $0x28] sm:$0xff]
        %v654 = vld [vmem:[%s2 + $0x30] sm:$0xff]
        %v655 = vld [vmem:[%s2 + $0x38] sm:$0xff]
        %v656 = vld [vmem:[%s2 + $0x40] sm:$0xff]
        %v657 = vld [vmem:[%s2 + $0x48] sm:$0xff]
        %v658 = vld [vmem:[%s2 + $0x50] sm:$0xff]
        %v659 = vld [vmem:[%s2 + $0x58] sm:$0xff]
        %v660 = vld [vmem:[%s3 + $0x1] sm:$0x1]
        %v661 = vlaneseq
        %v662 = vshrl.u32 %v661, 7
        %v663 = vsub.s32 0, %v662
        %v664 = vrot.slane %v660, %v663
        %vm665 = vcmask 523264
        %v667 = vsel %vm665, %v620, 0
        %v670 = vsel %vm665, %v621, 0
        %v673 = vsel %vm665, %v622, 0
        %v676 = vsel %vm665, %v623, 0
        %v679 = vsel %vm665, %v624, 0
        %v682 = vsel %vm665, %v625, 0
        %v685 = vsel %vm665, %v626, 0
        %v688 = vsel %vm665, %v627, 0
        %v691 = vsel %vm665, %v628, 0
        %v694 = vsel %vm665, %v629, 0
        %v697 = vsel %vm665, %v630, 0
        %v700 = vsel %vm665, %v631, 0
        %v703 = vsel %vm665, %v632, 0
        %v706 = vsel %vm665, %v633, 0
        %v709 = vsel %vm665, %v634, 0
        %v712 = vsel %vm665, %v635, 0
        %v715 = vsel %vm665, %v636, 0
        %v718 = vsel %vm665, %v637, 0
        %v721 = vsel %vm665, %v638, 0
        %v724 = vsel %vm665, %v639, 0
        %v727 = vsel %vm665, %v640, 0
        %v730 = vsel %vm665, %v641, 0
        %v733 = vsel %vm665, %v642, 0
        %v736 = vsel %vm665, %v643, 0
        %v739 = vsel %vm665, %v644, 0
        %v742 = vsel %vm665, %v645, 0
        %v745 = vsel %vm665, %v646, 0
        %v748 = vsel %vm665, %v647, 0
        %v751 = vsel %vm665, %v648, 0
        %v754 = vsel %vm665, %v649, 0
        %v757 = vsel %vm665, %v650, 0
        %v760 = vsel %vm665, %v651, 0
        %762 = vmatprep.subr.mxu0 0.0
        %763 = vmatpush1.msra.mxu0 %v652
        %764 = vmatprep.subr.mxu0 0.0
        %765 = vmatpush1.msra.mxu0 %v653
        %766 = vmatprep.subr.mxu0 0.0
        %767 = vmatpush1.msra.mxu0 %v654
        %768 = vmatprep.subr.mxu0 0.0
        %769 = vmatpush1.msra.mxu0 %v655
        %770 = vmatprep.subr.mxu0 0.0
        %771 = vmatpush1.msra.mxu0 %v656
        %772 = vmatprep.subr.mxu0 0.0
        %773 = vmatpush1.msra.mxu0 %v657
        %774 = vmatprep.subr.mxu0 0.0
        %775 = vmatpush1.msra.mxu0 %v658
        %776 = vmatprep.subr.mxu0 0.0
        %777 = vmatpush1.msra.mxu0 %v659
        %778 = vmatprep.subr.mxu0 0.0
        %779 = vmatpush1.msra.mxu0 0.0
        %780 = vmatprep.subr.mxu0 0.0
        %781 = vmatpush1.msra.mxu0 0.0
        %782 = vmatprep.subr.mxu0 0.0
        %783 = vmatpush1.msra.mxu0 0.0
        %784 = vmatprep.subr.mxu0 0.0
        %785 = vmatpush1.msra.mxu0 0.0
        %786 = vmatprep.subr.mxu0 0.0
        %787 = vmatpush1.msra.mxu0 0.0
        %788 = vmatprep.subr.mxu0 0.0
        %789 = vmatpush1.msra.mxu0 0.0
        %790 = vmatprep.subr.mxu0 0.0
        %791 = vmatpush1.msra.mxu0 0.0
        %792 = vmatprep.subr.mxu0 0.0
        %793 = vmatpush1.msra.mxu0 0.0
        %794 = vmatprep.subr.mxu0 0.0
        %795 = vmatpush1.msra.mxu0 0.0
        %796 = vmatprep.subr.mxu0 0.0
        %797 = vmatpush1.msra.mxu0 0.0
        %798 = vmatprep.subr.mxu0 0.0
        %799 = vmatpush1.msra.mxu0 0.0
        %800 = vmatprep.subr.mxu0 0.0
        %801 = vmatpush1.msra.mxu0 0.0
        %802 = vmatprep.subr.mxu0 0.0
        %803 = vmatpush1.msra.mxu0 0.0
        %804 = vmatprep.subr.mxu0 0.0
        %805 = vmatpush1.msra.mxu0 0.0
        %806 = vmatprep.subr.mxu0 0.0
        %807 = vmatpush1.msra.mxu0 0.0
        %808 = vmatprep.subr.mxu0 0.0
        %809 = vmatpush1.msra.mxu0 0.0
        %810 = vmatprep.subr.mxu0 0.0
        %811 = vmatpush1.msra.mxu0 0.0
        %812 = vmatprep.subr.mxu0 0.0
        %813 = vmatpush1.msra.mxu0 0.0
        %814 = vmatprep.subr.mxu0 0.0
        %815 = vmatpush1.msra.mxu0 0.0
        %816 = vmatprep.subr.mxu0 0.0
        %817 = vmatpush1.msra.mxu0 0.0
        %818 = vmatprep.subr.mxu0 0.0
        %819 = vmatpush1.msra.mxu0 0.0
        %820 = vmatprep.subr.mxu0 0.0
        %821 = vmatpush1.msra.mxu0 0.0
        %822 = vmatprep.subr.mxu0 0.0
        %823 = vmatpush1.msra.mxu0 0.0
        %824 = vmatprep.subr.mxu0 0.0
        %825 = vmatpush1.msra.mxu0 0.0
        %826 = vmatprep.mubr.f32.mxu0 0.0
        %827 = vmatmul.mubr.f32.gmra.mrb[0].mxu0 %v667
        %v828 = vpop.f32.mrb[0].mxu0
        %v829 = vadd.f32 %v664, %v828
        %v830 = vpop.f32.mrb[0].mxu0
        %831 = vmatprep.mubr.f32.mxu0 0.0
        %832 = vmatmul.mubr.f32.gmra.mrb[0].mxu0 %v670
        %v833 = vpop.f32.mrb[0].mxu0
        %v834 = vadd.f32 %v664, %v833
        %v835 = vpop.f32.mrb[0].mxu0
        %836 = vmatprep.mubr.f32.mxu0 0.0
        %837 = vmatmul.mubr.f32.gmra.mrb[0].mxu0 %v673
        %v838 = vpop.f32.mrb[0].mxu0
        %v839 = vadd.f32 %v664, %v838
        %v840 = vpop.f32.mrb[0].mxu0
        %841 = vmatprep.mubr.f32.mxu0 0.0
        %842 = vmatmul.mubr.f32.gmra.mrb[0].mxu0 %v676
        %v843 = vpop.f32.mrb[0].mxu0
        %v844 = vadd.f32 %v664, %v843
        %v845 = vpop.f32.mrb[0].mxu0
        %846 = vmatprep.mubr.f32.mxu0 0.0
        %847 = vmatmul.mubr.f32.gmra.mrb[0].mxu0 %v679
        %v848 = vpop.f32.mrb[0].mxu0
        %v849 = vadd.f32 %v664, %v848
        %v850 = vpop.f32.mrb[0].mxu0
        %851 = vmatprep.mubr.f32.mxu0 0.0
        %852 = vmatmul.mubr.f32.gmra.mrb[0].mxu0 %v682
        %v853 = vpop.f32.mrb[0].mxu0
        %v854 = vadd.f32 %v664, %v853
        %v855 = vpop.f32.mrb[0].mxu0
        %856 = vmatprep.mubr.f32.mxu0 0.0
        %857 = vmatmul.mubr.f32.gmra.mrb[0].mxu0 %v685
        %v858 = vpop.f32.mrb[0].mxu0
        %v859 = vadd.f32 %v664, %v858
        %v860 = vpop.f32.mrb[0].mxu0
        %861 = vmatprep.mubr.f32.mxu0 0.0
        %862 = vmatmul.mubr.f32.gmra.mrb[0].mxu0 %v688
        %v863 = vpop.f32.mrb[0].mxu0
        %v864 = vadd.f32 %v664, %v863
        %v865 = vpop.f32.mrb[0].mxu0
        %866 = vmatprep.mubr.f32.mxu0 0.0
        %867 = vmatmul.mubr.f32.gmra.mrb[0].mxu0 %v691
        %v868 = vpop.f32.mrb[0].mxu0
        %v869 = vadd.f32 %v664, %v868
        %v870 = vpop.f32.mrb[0].mxu0
        %871 = vmatprep.mubr.f32.mxu0 0.0
        %872 = vmatmul.mubr.f32.gmra.mrb[0].mxu0 %v694
        %v873 = vpop.f32.mrb[0].mxu0
        %v874 = vadd.f32 %v664, %v873
        %v875 = vpop.f32.mrb[0].mxu0
        %876 = vmatprep.mubr.f32.mxu0 0.0
        %877 = vmatmul.mubr.f32.gmra.mrb[0].mxu0 %v697
        %v878 = vpop.f32.mrb[0].mxu0
        %v879 = vadd.f32 %v664, %v878
        %v880 = vpop.f32.mrb[0].mxu0
        %881 = vmatprep.mubr.f32.mxu0 0.0
        %882 = vmatmul.mubr.f32.gmra.mrb[0].mxu0 %v700
        %v883 = vpop.f32.mrb[0].mxu0
        %v884 = vadd.f32 %v664, %v883
        %v885 = vpop.f32.mrb[0].mxu0
        %886 = vmatprep.mubr.f32.mxu0 0.0
        %887 = vmatmul.mubr.f32.gmra.mrb[0].mxu0 %v703
        %v888 = vpop.f32.mrb[0].mxu0
        %v889 = vadd.f32 %v664, %v888
        %v890 = vpop.f32.mrb[0].mxu0
        %891 = vmatprep.mubr.f32.mxu0 0.0
        %892 = vmatmul.mubr.f32.gmra.mrb[0].mxu0 %v706
        %v893 = vpop.f32.mrb[0].mxu0
        %v894 = vadd.f32 %v664, %v893
        %v895 = vpop.f32.mrb[0].mxu0
        %896 = vmatprep.mubr.f32.mxu0 0.0
        %897 = vmatmul.mubr.f32.gmra.mrb[0].mxu0 %v709
        %v898 = vpop.f32.mrb[0].mxu0
        %v899 = vadd.f32 %v664, %v898
        %v900 = vpop.f32.mrb[0].mxu0
        %901 = vmatprep.mubr.f32.mxu0 0.0
        %902 = vmatmul.mubr.f32.gmra.mrb[0].mxu0 %v712
        %v903 = vpop.f32.mrb[0].mxu0
        %v904 = vadd.f32 %v664, %v903
        %v905 = vpop.f32.mrb[0].mxu0
        %906 = vmatprep.mubr.f32.mxu0 0.0
        %907 = vmatmul.mubr.f32.gmra.mrb[0].mxu0 %v715
        %v908 = vpop.f32.mrb[0].mxu0
        %v909 = vadd.f32 %v664, %v908
        %v910 = vpop.f32.mrb[0].mxu0
        %911 = vmatprep.mubr.f32.mxu0 0.0
        %912 = vmatmul.mubr.f32.gmra.mrb[0].mxu0 %v718
        %v913 = vpop.f32.mrb[0].mxu0
        %v914 = vadd.f32 %v664, %v913
        %v915 = vpop.f32.mrb[0].mxu0
        %916 = vmatprep.mubr.f32.mxu0 0.0
        %917 = vmatmul.mubr.f32.gmra.mrb[0].mxu0 %v721
        %v918 = vpop.f32.mrb[0].mxu0
        %v919 = vadd.f32 %v664, %v918
        %v920 = vpop.f32.mrb[0].mxu0
        %921 = vmatprep.mubr.f32.mxu0 0.0
        %922 = vmatmul.mubr.f32.gmra.mrb[0].mxu0 %v724
        %v923 = vpop.f32.mrb[0].mxu0
        %v924 = vadd.f32 %v664, %v923
        %v925 = vpop.f32.mrb[0].mxu0
        %926 = vmatprep.mubr.f32.mxu0 0.0
        %927 = vmatmul.mubr.f32.gmra.mrb[0].mxu0 %v727
        %v928 = vpop.f32.mrb[0].mxu0
        %v929 = vadd.f32 %v664, %v928
        %v930 = vpop.f32.mrb[0].mxu0
        %931 = vmatprep.mubr.f32.mxu0 0.0
        %932 = vmatmul.mubr.f32.gmra.mrb[0].mxu0 %v730
        %v933 = vpop.f32.mrb[0].mxu0
        %v934 = vadd.f32 %v664, %v933
        %v935 = vpop.f32.mrb[0].mxu0
        %936 = vmatprep.mubr.f32.mxu0 0.0
        %937 = vmatmul.mubr.f32.gmra.mrb[0].mxu0 %v733
        %v938 = vpop.f32.mrb[0].mxu0
        %v939 = vadd.f32 %v664, %v938
        %v940 = vpop.f32.mrb[0].mxu0
        %941 = vmatprep.mubr.f32.mxu0 0.0
        %942 = vmatmul.mubr.f32.gmra.mrb[0].mxu0 %v736
        %v943 = vpop.f32.mrb[0].mxu0
        %v944 = vadd.f32 %v664, %v943
        %v945 = vpop.f32.mrb[0].mxu0
        %946 = vmatprep.mubr.f32.mxu0 0.0
        %947 = vmatmul.mubr.f32.gmra.mrb[0].mxu0 %v739
        %v948 = vpop.f32.mrb[0].mxu0
        %v949 = vadd.f32 %v664, %v948
        %v950 = vpop.f32.mrb[0].mxu0
        %951 = vmatprep.mubr.f32.mxu0 0.0
        %952 = vmatmul.mubr.f32.gmra.mrb[0].mxu0 %v742
        %v953 = vpop.f32.mrb[0].mxu0
        %v954 = vadd.f32 %v664, %v953
        %v955 = vpop.f32.mrb[0].mxu0
        %956 = vmatprep.mubr.f32.mxu0 0.0
        %957 = vmatmul.mubr.f32.gmra.mrb[0].mxu0 %v745
        %v958 = vpop.f32.mrb[0].mxu0
        %v959 = vadd.f32 %v664, %v958
        %v960 = vpop.f32.mrb[0].mxu0
        %961 = vmatprep.mubr.f32.mxu0 0.0
        %962 = vmatmul.mubr.f32.gmra.mrb[0].mxu0 %v748
        %v963 = vpop.f32.mrb[0].mxu0
        %v964 = vadd.f32 %v664, %v963
        %v965 = vpop.f32.mrb[0].mxu0
        %966 = vmatprep.mubr.f32.mxu0 0.0
        %967 = vmatmul.mubr.f32.gmra.mrb[0].mxu0 %v751
        %v968 = vpop.f32.mrb[0].mxu0
        %v969 = vadd.f32 %v664, %v968
        %v970 = vpop.f32.mrb[0].mxu0
        %971 = vmatprep.mubr.f32.mxu0 0.0
        %972 = vmatmul.mubr.f32.gmra.mrb[0].mxu0 %v754
        %v973 = vpop.f32.mrb[0].mxu0
        %v974 = vadd.f32 %v664, %v973
        %v975 = vpop.f32.mrb[0].mxu0
        %976 = vmatprep.mubr.f32.mxu0 0.0
        %977 = vmatmul.mubr.f32.gmra.mrb[0].mxu0 %v757
        %v978 = vpop.f32.mrb[0].mxu0
        %v979 = vadd.f32 %v664, %v978
        %v980 = vpop.f32.mrb[0].mxu0
        %981 = vmatprep.mubr.f32.mxu0 0.0
        %982 = vmatmul.mubr.f32.gmra.mrb[0].mxu0 %v760
        %v983 = vpop.f32.mrb[0].mxu0
        %v984 = vadd.f32 %v664, %v983
        %v985 = vpop.f32.mrb[0].mxu0
        %986 = vdwg.mxu0
        %v987 = vmax.f32 %v829, 0.0
        %v988 = vmax.f32 %v834, 0.0
        %v989 = vmax.f32 %v839, 0.0
        %v990 = vmax.f32 %v844, 0.0
        %v991 = vmax.f32 %v849, 0.0
        %v992 = vmax.f32 %v854, 0.0
        %v993 = vmax.f32 %v859, 0.0
        %v994 = vmax.f32 %v864, 0.0
        %v995 = vmax.f32 %v869, 0.0
        %v996 = vmax.f32 %v874, 0.0
        %v997 = vmax.f32 %v879, 0.0
        %v998 = vmax.f32 %v884, 0.0
        %v999 = vmax.f32 %v889, 0.0
        %v1000 = vmax.f32 %v894, 0.0
        %v1001 = vmax.f32 %v899, 0.0
        %v1002 = vmax.f32 %v904, 0.0
        %v1003 = vmax.f32 %v909, 0.0
        %v1004 = vmax.f32 %v914, 0.0
        %v1005 = vmax.f32 %v919, 0.0
        %v1006 = vmax.f32 %v924, 0.0
        %v1007 = vmax.f32 %v929, 0.0
        %v1008 = vmax.f32 %v934, 0.0
        %v1009 = vmax.f32 %v939, 0.0
        %v1010 = vmax.f32 %v944, 0.0
        %v1011 = vmax.f32 %v949, 0.0
        %v1012 = vmax.f32 %v954, 0.0
        %v1013 = vmax.f32 %v959, 0.0
        %v1014 = vmax.f32 %v964, 0.0
        %v1015 = vmax.f32 %v969, 0.0
        %v1016 = vmax.f32 %v974, 0.0
        %v1017 = vmax.f32 %v979, 0.0
        %v1018 = vmax.f32 %v984, 0.0
        %v1019 = vld [vmem:[%s2 + $0x60] sm:$0xff]
        %v1020 = vld [vmem:[%s2 + $0x68] sm:$0xff]
        %v1021 = vld [vmem:[%s2 + $0x70] sm:$0xff]
        %v1022 = vld [vmem:[%s2 + $0x78] sm:$0xff]
        %v1023 = vld [vmem:[%s3 + $0x2] sm:$0x1]
        %v1024 = vlaneseq
        %v1025 = vshrl.u32 %v1024, 7
        %v1026 = vsub.s32 0, %v1025
        %v1027 = vrot.slane %v1023, %v1026
        %vm1028 = vcmask 261120
        %v1030 = vsel %vm1028, %v987, 0
        %v1033 = vsel %vm1028, %v988, 0
        %v1036 = vsel %vm1028, %v989, 0
        %v1039 = vsel %vm1028, %v990, 0
        %v1042 = vsel %vm1028, %v991, 0
        %v1045 = vsel %vm1028, %v992, 0
        %v1048 = vsel %vm1028, %v993, 0
        %v1051 = vsel %vm1028, %v994, 0
        %v1054 = vsel %vm1028, %v995, 0
        %v1057 = vsel %vm1028, %v996, 0
        %v1060 = vsel %vm1028, %v997, 0
        %v1063 = vsel %vm1028, %v998, 0
        %v1066 = vsel %vm1028, %v999, 0
        %v1069 = vsel %vm1028, %v1000, 0
        %v1072 = vsel %vm1028, %v1001, 0
        %v1075 = vsel %vm1028, %v1002, 0
        %v1078 = vsel %vm1028, %v1003, 0
        %v1081 = vsel %vm1028, %v1004, 0
        %v1084 = vsel %vm1028, %v1005, 0
        %v1087 = vsel %vm1028, %v1006, 0
        %v1090 = vsel %vm1028, %v1007, 0
        %v1093 = vsel %vm1028, %v1008, 0
        %v1096 = vsel %vm1028, %v1009, 0
        %v1099 = vsel %vm1028, %v1010, 0
        %v1102 = vsel %vm1028, %v1011, 0
        %v1105 = vsel %vm1028, %v1012, 0
        %v1108 = vsel %vm1028, %v1013, 0
        %v1111 = vsel %vm1028, %v1014, 0
        %v1114 = vsel %vm1028, %v1015, 0
        %v1117 = vsel %vm1028, %v1016, 0
        %v1120 = vsel %vm1028, %v1017, 0
        %v1123 = vsel %vm1028, %v1018, 0
        %1125 = vmatprep.subr.mxu0 0.0
        %1126 = vmatpush1.msra.mxu0 %v1019
        %1127 = vmatprep.subr.mxu0 0.0
        %1128 = vmatpush1.msra.mxu0 %v1020
        %1129 = vmatprep.subr.mxu0 0.0
        %1130 = vmatpush1.msra.mxu0 %v1021
        %1131 = vmatprep.subr.mxu0 0.0
        %1132 = vmatpush1.msra.mxu0 %v1022
        %1133 = vmatprep.subr.mxu0 0.0
        %1134 = vmatpush1.msra.mxu0 0.0
        %1135 = vmatprep.subr.mxu0 0.0
        %1136 = vmatpush1.msra.mxu0 0.0
        %1137 = vmatprep.subr.mxu0 0.0
        %1138 = vmatpush1.msra.mxu0 0.0
        %1139 = vmatprep.subr.mxu0 0.0
        %1140 = vmatpush1.msra.mxu0 0.0
        %1141 = vmatprep.subr.mxu0 0.0
        %1142 = vmatpush1.msra.mxu0 0.0
        %1143 = vmatprep.subr.mxu0 0.0
        %1144 = vmatpush1.msra.mxu0 0.0
        %1145 = vmatprep.subr.mxu0 0.0
        %1146 = vmatpush1.msra.mxu0 0.0
        %1147 = vmatprep.subr.mxu0 0.0
        %1148 = vmatpush1.msra.mxu0 0.0
        %1149 = vmatprep.subr.mxu0 0.0
        %1150 = vmatpush1.msra.mxu0 0.0
        %1151 = vmatprep.subr.mxu0 0.0
        %1152 = vmatpush1.msra.mxu0 0.0
        %1153 = vmatprep.subr.mxu0 0.0
        %1154 = vmatpush1.msra.mxu0 0.0
        %1155 = vmatprep.subr.mxu0 0.0
        %1156 = vmatpush1.msra.mxu0 0.0
        %1157 = vmatprep.subr.mxu0 0.0
        %1158 = vmatpush1.msra.mxu0 0.0
        %1159 = vmatprep.subr.mxu0 0.0
        %1160 = vmatpush1.msra.mxu0 0.0
        %1161 = vmatprep.subr.mxu0 0.0
        %1162 = vmatpush1.msra.mxu0 0.0
        %1163 = vmatprep.subr.mxu0 0.0
        %1164 = vmatpush1.msra.mxu0 0.0
        %1165 = vmatprep.subr.mxu0 0.0
        %1166 = vmatpush1.msra.mxu0 0.0
        %1167 = vmatprep.subr.mxu0 0.0
        %1168 = vmatpush1.msra.mxu0 0.0
        %1169 = vmatprep.subr.mxu0 0.0
        %1170 = vmatpush1.msra.mxu0 0.0
        %1171 = vmatprep.subr.mxu0 0.0
        %1172 = vmatpush1.msra.mxu0 0.0
        %1173 = vmatprep.subr.mxu0 0.0
        %1174 = vmatpush1.msra.mxu0 0.0
        %1175 = vmatprep.subr.mxu0 0.0
        %1176 = vmatpush1.msra.mxu0 0.0
        %1177 = vmatprep.subr.mxu0 0.0
        %1178 = vmatpush1.msra.mxu0 0.0
        %1179 = vmatprep.subr.mxu0 0.0
        %1180 = vmatpush1.msra.mxu0 0.0
        %1181 = vmatprep.subr.mxu0 0.0
        %1182 = vmatpush1.msra.mxu0 0.0
        %1183 = vmatprep.subr.mxu0 0.0
        %1184 = vmatpush1.msra.mxu0 0.0
        %1185 = vmatprep.subr.mxu0 0.0
        %1186 = vmatpush1.msra.mxu0 0.0
        %1187 = vmatprep.subr.mxu0 0.0
        %1188 = vmatpush1.msra.mxu0 0.0
        %1189 = vmatprep.mubr.f32.mxu0 0.0
        %1190 = vmatmul.mubr.f32.gmra.mrb[0].mxu0 %v1030
        %v1191 = vpop.f32.mrb[0].mxu0
        %v1192 = vadd.f32 %v1027, %v1191
        %v1193 = vpop.f32.mrb[0].mxu0
        %1194 = vmatprep.mubr.f32.mxu0 0.0
        %1195 = vmatmul.mubr.f32.gmra.mrb[0].mxu0 %v1033
        %v1196 = vpop.f32.mrb[0].mxu0
        %v1197 = vadd.f32 %v1027, %v1196
        %v1198 = vpop.f32.mrb[0].mxu0
        %1199 = vmatprep.mubr.f32.mxu0 0.0
        %1200 = vmatmul.mubr.f32.gmra.mrb[0].mxu0 %v1036
        %v1201 = vpop.f32.mrb[0].mxu0
        %v1202 = vadd.f32 %v1027, %v1201
        %v1203 = vpop.f32.mrb[0].mxu0
        %1204 = vmatprep.mubr.f32.mxu0 0.0
        %1205 = vmatmul.mubr.f32.gmra.mrb[0].mxu0 %v1039
        %v1206 = vpop.f32.mrb[0].mxu0
        %v1207 = vadd.f32 %v1027, %v1206
        %v1208 = vpop.f32.mrb[0].mxu0
        %1209 = vmatprep.mubr.f32.mxu0 0.0
        %1210 = vmatmul.mubr.f32.gmra.mrb[0].mxu0 %v1042
        %v1211 = vpop.f32.mrb[0].mxu0
        %v1212 = vadd.f32 %v1027, %v1211
        %v1213 = vpop.f32.mrb[0].mxu0
        %1214 = vmatprep.mubr.f32.mxu0 0.0
        %1215 = vmatmul.mubr.f32.gmra.mrb[0].mxu0 %v1045
        %v1216 = vpop.f32.mrb[0].mxu0
        %v1217 = vadd.f32 %v1027, %v1216
        %v1218 = vpop.f32.mrb[0].mxu0
        %1219 = vmatprep.mubr.f32.mxu0 0.0
        %1220 = vmatmul.mubr.f32.gmra.mrb[0].mxu0 %v1048
        %v1221 = vpop.f32.mrb[0].mxu0
        %v1222 = vadd.f32 %v1027, %v1221
        %v1223 = vpop.f32.mrb[0].mxu0
        %1224 = vmatprep.mubr.f32.mxu0 0.0
        %1225 = vmatmul.mubr.f32.gmra.mrb[0].mxu0 %v1051
        %v1226 = vpop.f32.mrb[0].mxu0
        %v1227 = vadd.f32 %v1027, %v1226
        %v1228 = vpop.f32.mrb[0].mxu0
        %1229 = vmatprep.mubr.f32.mxu0 0.0
        %1230 = vmatmul.mubr.f32.gmra.mrb[0].mxu0 %v1054
        %v1231 = vpop.f32.mrb[0].mxu0
        %v1232 = vadd.f32 %v1027, %v1231
        %v1233 = vpop.f32.mrb[0].mxu0
        %1234 = vmatprep.mubr.f32.mxu0 0.0
        %1235 = vmatmul.mubr.f32.gmra.mrb[0].mxu0 %v1057
        %v1236 = vpop.f32.mrb[0].mxu0
        %v1237 = vadd.f32 %v1027, %v1236
        %v1238 = vpop.f32.mrb[0].mxu0
        %1239 = vmatprep.mubr.f32.mxu0 0.0
        %1240 = vmatmul.mubr.f32.gmra.mrb[0].mxu0 %v1060
        %v1241 = vpop.f32.mrb[0].mxu0
        %v1242 = vadd.f32 %v1027, %v1241
        %v1243 = vpop.f32.mrb[0].mxu0
        %1244 = vmatprep.mubr.f32.mxu0 0.0
        %1245 = vmatmul.mubr.f32.gmra.mrb[0].mxu0 %v1063
        %v1246 = vpop.f32.mrb[0].mxu0
        %v1247 = vadd.f32 %v1027, %v1246
        %v1248 = vpop.f32.mrb[0].mxu0
        %1249 = vmatprep.mubr.f32.mxu0 0.0
        %1250 = vmatmul.mubr.f32.gmra.mrb[0].mxu0 %v1066
        %v1251 = vpop.f32.mrb[0].mxu0
        %v1252 = vadd.f32 %v1027, %v1251
        %v1253 = vpop.f32.mrb[0].mxu0
        %1254 = vmatprep.mubr.f32.mxu0 0.0
        %1255 = vmatmul.mubr.f32.gmra.mrb[0].mxu0 %v1069
        %v1256 = vpop.f32.mrb[0].mxu0
        %v1257 = vadd.f32 %v1027, %v1256
        %v1258 = vpop.f32.mrb[0].mxu0
        %1259 = vmatprep.mubr.f32.mxu0 0.0
        %1260 = vmatmul.mubr.f32.gmra.mrb[0].mxu0 %v1072
        %v1261 = vpop.f32.mrb[0].mxu0
        %v1262 = vadd.f32 %v1027, %v1261
        %v1263 = vpop.f32.mrb[0].mxu0
        %1264 = vmatprep.mubr.f32.mxu0 0.0
        %1265 = vmatmul.mubr.f32.gmra.mrb[0].mxu0 %v1075
        %v1266 = vpop.f32.mrb[0].mxu0
        %v1267 = vadd.f32 %v1027, %v1266
        %v1268 = vpop.f32.mrb[0].mxu0
        %1269 = vmatprep.mubr.f32.mxu0 0.0
        %1270 = vmatmul.mubr.f32.gmra.mrb[0].mxu0 %v1078
        %v1271 = vpop.f32.mrb[0].mxu0
        %v1272 = vadd.f32 %v1027, %v1271
        %v1273 = vpop.f32.mrb[0].mxu0
        %1274 = vmatprep.mubr.f32.mxu0 0.0
        %1275 = vmatmul.mubr.f32.gmra.mrb[0].mxu0 %v1081
        %v1276 = vpop.f32.mrb[0].mxu0
        %v1277 = vadd.f32 %v1027, %v1276
        %v1278 = vpop.f32.mrb[0].mxu0
        %1279 = vmatprep.mubr.f32.mxu0 0.0
        %1280 = vmatmul.mubr.f32.gmra.mrb[0].mxu0 %v1084
        %v1281 = vpop.f32.mrb[0].mxu0
        %v1282 = vadd.f32 %v1027, %v1281
        %v1283 = vpop.f32.mrb[0].mxu0
        %1284 = vmatprep.mubr.f32.mxu0 0.0
        %1285 = vmatmul.mubr.f32.gmra.mrb[0].mxu0 %v1087
        %v1286 = vpop.f32.mrb[0].mxu0
        %v1287 = vadd.f32 %v1027, %v1286
        %v1288 = vpop.f32.mrb[0].mxu0
        %1289 = vmatprep.mubr.f32.mxu0 0.0
        %1290 = vmatmul.mubr.f32.gmra.mrb[0].mxu0 %v1090
        %v1291 = vpop.f32.mrb[0].mxu0
        %v1292 = vadd.f32 %v1027, %v1291
        %v1293 = vpop.f32.mrb[0].mxu0
        %1294 = vmatprep.mubr.f32.mxu0 0.0
        %1295 = vmatmul.mubr.f32.gmra.mrb[0].mxu0 %v1093
        %v1296 = vpop.f32.mrb[0].mxu0
        %v1297 = vadd.f32 %v1027, %v1296
        %v1298 = vpop.f32.mrb[0].mxu0
        %1299 = vmatprep.mubr.f32.mxu0 0.0
        %1300 = vmatmul.mubr.f32.gmra.mrb[0].mxu0 %v1096
        %v1301 = vpop.f32.mrb[0].mxu0
        %v1302 = vadd.f32 %v1027, %v1301
        %v1303 = vpop.f32.mrb[0].mxu0
        %1304 = vmatprep.mubr.f32.mxu0 0.0
        %1305 = vmatmul.mubr.f32.gmra.mrb[0].mxu0 %v1099
        %v1306 = vpop.f32.mrb[0].mxu0
        %v1307 = vadd.f32 %v1027, %v1306
        %v1308 = vpop.f32.mrb[0].mxu0
        %1309 = vmatprep.mubr.f32.mxu0 0.0
        %1310 = vmatmul.mubr.f32.gmra.mrb[0].mxu0 %v1102
        %v1311 = vpop.f32.mrb[0].mxu0
        %v1312 = vadd.f32 %v1027, %v1311
        %v1313 = vpop.f32.mrb[0].mxu0
        %1314 = vmatprep.mubr.f32.mxu0 0.0
        %1315 = vmatmul.mubr.f32.gmra.mrb[0].mxu0 %v1105
        %v1316 = vpop.f32.mrb[0].mxu0
        %v1317 = vadd.f32 %v1027, %v1316
        %v1318 = vpop.f32.mrb[0].mxu0
        %1319 = vmatprep.mubr.f32.mxu0 0.0
        %1320 = vmatmul.mubr.f32.gmra.mrb[0].mxu0 %v1108
        %v1321 = vpop.f32.mrb[0].mxu0
        %v1322 = vadd.f32 %v1027, %v1321
        %v1323 = vpop.f32.mrb[0].mxu0
        %1324 = vmatprep.mubr.f32.mxu0 0.0
        %1325 = vmatmul.mubr.f32.gmra.mrb[0].mxu0 %v1111
        %v1326 = vpop.f32.mrb[0].mxu0
        %v1327 = vadd.f32 %v1027, %v1326
        %v1328 = vpop.f32.mrb[0].mxu0
        %1329 = vmatprep.mubr.f32.mxu0 0.0
        %1330 = vmatmul.mubr.f32.gmra.mrb[0].mxu0 %v1114
        %v1331 = vpop.f32.mrb[0].mxu0
        %v1332 = vadd.f32 %v1027, %v1331
        %v1333 = vpop.f32.mrb[0].mxu0
        %1334 = vmatprep.mubr.f32.mxu0 0.0
        %1335 = vmatmul.mubr.f32.gmra.mrb[0].mxu0 %v1117
        %v1336 = vpop.f32.mrb[0].mxu0
        %v1337 = vadd.f32 %v1027, %v1336
        %v1338 = vpop.f32.mrb[0].mxu0
        %1339 = vmatprep.mubr.f32.mxu0 0.0
        %1340 = vmatmul.mubr.f32.gmra.mrb[0].mxu0 %v1120
        %v1341 = vpop.f32.mrb[0].mxu0
        %v1342 = vadd.f32 %v1027, %v1341
        %v1343 = vpop.f32.mrb[0].mxu0
        %1344 = vmatprep.mubr.f32.mxu0 0.0
        %1345 = vmatmul.mubr.f32.gmra.mrb[0].mxu0 %v1123
        %v1346 = vpop.f32.mrb[0].mxu0
        %v1347 = vadd.f32 %v1027, %v1346
        %v1348 = vpop.f32.mrb[0].mxu0
        %1349 = vdwg.mxu0
        %v1350 = vmul.f32 %v1192, 0.5
        %v1351 = vmul.f32 %v1197, 0.5
        %v1352 = vmul.f32 %v1202, 0.5
        %v1353 = vmul.f32 %v1207, 0.5
        %v1354 = vmul.f32 %v1212, 0.5
        %v1355 = vmul.f32 %v1217, 0.5
        %v1356 = vmul.f32 %v1222, 0.5
        %v1357 = vmul.f32 %v1227, 0.5
        %v1358 = vmul.f32 %v1232, 0.5
        %v1359 = vmul.f32 %v1237, 0.5
        %v1360 = vmul.f32 %v1242, 0.5
        %v1361 = vmul.f32 %v1247, 0.5
        %v1362 = vmul.f32 %v1252, 0.5
        %v1363 = vmul.f32 %v1257, 0.5
        %v1364 = vmul.f32 %v1262, 0.5
        %v1365 = vmul.f32 %v1267, 0.5
        %v1366 = vmul.f32 %v1272, 0.5
        %v1367 = vmul.f32 %v1277, 0.5
        %v1368 = vmul.f32 %v1282, 0.5
        %v1369 = vmul.f32 %v1287, 0.5
        %v1370 = vmul.f32 %v1292, 0.5
        %v1371 = vmul.f32 %v1297, 0.5
        %v1372 = vmul.f32 %v1302, 0.5
        %v1373 = vmul.f32 %v1307, 0.5
        %v1374 = vmul.f32 %v1312, 0.5
        %v1375 = vmul.f32 %v1317, 0.5
        %v1376 = vmul.f32 %v1322, 0.5
        %v1377 = vmul.f32 %v1327, 0.5
        %v1378 = vmul.f32 %v1332, 0.5
        %v1379 = vmul.f32 %v1337, 0.5
        %v1380 = vmul.f32 %v1342, 0.5
        %v1381 = vmul.f32 %v1347, 0.5
        %v1382 = vmul.f32 %v1350, 1.442695
        %v1383 = vpow.pop %v1382
        %v1384 = vmul.f32 %v1351, 1.442695
        %v1385 = vpow.pop %v1384
        %v1386 = vmul.f32 %v1352, 1.442695
        %v1387 = vpow.pop %v1386
        %v1388 = vmul.f32 %v1353, 1.442695
        %v1389 = vpow.pop %v1388
        %v1390 = vmul.f32 %v1354, 1.442695
        %v1391 = vpow.pop %v1390
        %v1392 = vmul.f32 %v1355, 1.442695
        %v1393 = vpow.pop %v1392
        %v1394 = vmul.f32 %v1356, 1.442695
        %v1395 = vpow.pop %v1394
        %v1396 = vmul.f32 %v1357, 1.442695
        %v1397 = vpow.pop %v1396
        %v1398 = vmul.f32 %v1358, 1.442695
        %v1399 = vpow.pop %v1398
        %v1400 = vmul.f32 %v1359, 1.442695
        %v1401 = vpow.pop %v1400
        %v1402 = vmul.f32 %v1360, 1.442695
        %v1403 = vpow.pop %v1402
        %v1404 = vmul.f32 %v1361, 1.442695
        %v1405 = vpow.pop %v1404
        %v1406 = vmul.f32 %v1362, 1.442695
        %v1407 = vpow.pop %v1406
        %v1408 = vmul.f32 %v1363, 1.442695
        %v1409 = vpow.pop %v1408
        %v1410 = vmul.f32 %v1364, 1.442695
        %v1411 = vpow.pop %v1410
        %v1412 = vmul.f32 %v1365, 1.442695
        %v1413 = vpow.pop %v1412
        %v1414 = vmul.f32 %v1366, 1.442695
        %v1415 = vpow.pop %v1414
        %v1416 = vmul.f32 %v1367, 1.442695
        %v1417 = vpow.pop %v1416
        %v1418 = vmul.f32 %v1368, 1.442695
        %v1419 = vpow.pop %v1418
        %v1420 = vmul.f32 %v1369, 1.442695
        %v1421 = vpow.pop %v1420
        %v1422 = vmul.f32 %v1370, 1.442695
        %v1423 = vpow.pop %v1422
        %v1424 = vmul.f32 %v1371, 1.442695
        %v1425 = vpow.pop %v1424
        %v1426 = vmul.f32 %v1372, 1.442695
        %v1427 = vpow.pop %v1426
        %v1428 = vmul.f32 %v1373, 1.442695
        %v1429 = vpow.pop %v1428
        %v1430 = vmul.f32 %v1374, 1.442695
        %v1431 = vpow.pop %v1430
        %v1432 = vmul.f32 %v1375, 1.442695
        %v1433 = vpow.pop %v1432
        %v1434 = vmul.f32 %v1376, 1.442695
        %v1435 = vpow.pop %v1434
        %v1436 = vmul.f32 %v1377, 1.442695
        %v1437 = vpow.pop %v1436
        %v1438 = vmul.f32 %v1378, 1.442695
        %v1439 = vpow.pop %v1438
        %v1440 = vmul.f32 %v1379, 1.442695
        %v1441 = vpow.pop %v1440
        %v1442 = vmul.f32 %v1380, 1.442695
        %v1443 = vpow.pop %v1442
        %v1444 = vmul.f32 %v1381, 1.442695
        %v1445 = vpow.pop %v1444
        %1478 = vrot.lane.b32.xlu0 %v253, 2
        %v1479 = vpop.permute.xlu0 %1478
        %1480 = vrot.lane.b32.xlu0 %v254, 2
        %v1481 = vpop.permute.xlu0 %1480
        %1482 = vrot.lane.b32.xlu0 %v255, 2
        %v1483 = vpop.permute.xlu0 %1482
        %1484 = vrot.lane.b32.xlu0 %v256, 2
        %v1485 = vpop.permute.xlu0 %1484
        %1486 = vrot.lane.b32.xlu0 %v257, 2
        %v1487 = vpop.permute.xlu0 %1486
        %1488 = vrot.lane.b32.xlu0 %v258, 2
        %v1489 = vpop.permute.xlu0 %1488
        %1490 = vrot.lane.b32.xlu0 %v259, 2
        %v1491 = vpop.permute.xlu0 %1490
        %1492 = vrot.lane.b32.xlu0 %v260, 2
        %v1493 = vpop.permute.xlu0 %1492
        %1494 = vrot.lane.b32.xlu0 %v261, 2
        %v1495 = vpop.permute.xlu0 %1494
        %1496 = vrot.lane.b32.xlu0 %v262, 2
        %v1497 = vpop.permute.xlu0 %1496
        %1498 = vrot.lane.b32.xlu0 %v263, 2
        %v1499 = vpop.permute.xlu0 %1498
        %1500 = vrot.lane.b32.xlu0 %v264, 2
        %v1501 = vpop.permute.xlu0 %1500
        %1502 = vrot.lane.b32.xlu0 %v265, 2
        %v1503 = vpop.permute.xlu0 %1502
        %1504 = vrot.lane.b32.xlu0 %v266, 2
        %v1505 = vpop.permute.xlu0 %1504
        %1506 = vrot.lane.b32.xlu0 %v267, 2
        %v1507 = vpop.permute.xlu0 %1506
        %1508 = vrot.lane.b32.xlu0 %v268, 2
        %v1509 = vpop.permute.xlu0 %1508
        %1510 = vrot.lane.b32.xlu0 %v269, 2
        %v1511 = vpop.permute.xlu0 %1510
        %1512 = vrot.lane.b32.xlu0 %v270, 2
        %v1513 = vpop.permute.xlu0 %1512
        %1514 = vrot.lane.b32.xlu0 %v271, 2
        %v1515 = vpop.permute.xlu0 %1514
        %1516 = vrot.lane.b32.xlu0 %v272, 2
        %v1517 = vpop.permute.xlu0 %1516
        %1518 = vrot.lane.b32.xlu0 %v273, 2
        %v1519 = vpop.permute.xlu0 %1518
        %1520 = vrot.lane.b32.xlu0 %v274, 2
        %v1521 = vpop.permute.xlu0 %1520
        %1522 = vrot.lane.b32.xlu0 %v275, 2
        %v1523 = vpop.permute.xlu0 %1522
        %1524 = vrot.lane.b32.xlu0 %v276, 2
        %v1525 = vpop.permute.xlu0 %1524
        %1526 = vrot.lane.b32.xlu0 %v277, 2
        %v1527 = vpop.permute.xlu0 %1526
        %1528 = vrot.lane.b32.xlu0 %v278, 2
        %v1529 = vpop.permute.xlu0 %1528
        %1530 = vrot.lane.b32.xlu0 %v279, 2
        %v1531 = vpop.permute.xlu0 %1530
        %1532 = vrot.lane.b32.xlu0 %v280, 2
        %v1533 = vpop.permute.xlu0 %1532
        %1534 = vrot.lane.b32.xlu0 %v281, 2
        %v1535 = vpop.permute.xlu0 %1534
        %1536 = vrot.lane.b32.xlu0 %v282, 2
        %v1537 = vpop.permute.xlu0 %1536
        %1538 = vrot.lane.b32.xlu0 %v283, 2
        %v1539 = vpop.permute.xlu0 %1538
        %1540 = vrot.lane.b32.xlu0 %v284, 2
        %v1541 = vpop.permute.xlu0 %1540
        %v1574 = vmul.f32 %v1383, %v1479
        %v1575 = vmul.f32 %v1385, %v1481
        %v1576 = vmul.f32 %v1387, %v1483
        %v1577 = vmul.f32 %v1389, %v1485
        %v1578 = vmul.f32 %v1391, %v1487
        %v1579 = vmul.f32 %v1393, %v1489
        %v1580 = vmul.f32 %v1395, %v1491
        %v1581 = vmul.f32 %v1397, %v1493
        %v1582 = vmul.f32 %v1399, %v1495
        %v1583 = vmul.f32 %v1401, %v1497
        %v1584 = vmul.f32 %v1403, %v1499
        %v1585 = vmul.f32 %v1405, %v1501
        %v1586 = vmul.f32 %v1407, %v1503
        %v1587 = vmul.f32 %v1409, %v1505
        %v1588 = vmul.f32 %v1411, %v1507
        %v1589 = vmul.f32 %v1413, %v1509
        %v1590 = vmul.f32 %v1415, %v1511
        %v1591 = vmul.f32 %v1417, %v1513
        %v1592 = vmul.f32 %v1419, %v1515
        %v1593 = vmul.f32 %v1421, %v1517
        %v1594 = vmul.f32 %v1423, %v1519
        %v1595 = vmul.f32 %v1425, %v1521
        %v1596 = vmul.f32 %v1427, %v1523
        %v1597 = vmul.f32 %v1429, %v1525
        %v1598 = vmul.f32 %v1431, %v1527
        %v1599 = vmul.f32 %v1433, %v1529
        %v1600 = vmul.f32 %v1435, %v1531
        %v1601 = vmul.f32 %v1437, %v1533
        %v1602 = vmul.f32 %v1439, %v1535
        %v1603 = vmul.f32 %v1441, %v1537
        %v1604 = vmul.f32 %v1443, %v1539
        %v1605 = vmul.f32 %v1445, %v1541
        %1638 = vrot.lane.b32.xlu0 %v1574, 126
        %v1639 = vpop.permute.xlu0 %1638
        %1640 = vrot.lane.b32.xlu0 %v1575, 126
        %v1641 = vpop.permute.xlu0 %1640
        %1642 = vrot.lane.b32.xlu0 %v1576, 126
        %v1643 = vpop.permute.xlu0 %1642
        %1644 = vrot.lane.b32.xlu0 %v1577, 126
        %v1645 = vpop.permute.xlu0 %1644
        %1646 = vrot.lane.b32.xlu0 %v1578, 126
        %v1647 = vpop.permute.xlu0 %1646
        %1648 = vrot.lane.b32.xlu0 %v1579, 126
        %v1649 = vpop.permute.xlu0 %1648
        %1650 = vrot.lane.b32.xlu0 %v1580, 126
        %v1651 = vpop.permute.xlu0 %1650
        %1652 = vrot.lane.b32.xlu0 %v1581, 126
        %v1653 = vpop.permute.xlu0 %1652
        %1654 = vrot.lane.b32.xlu0 %v1582, 126
        %v1655 = vpop.permute.xlu0 %1654
        %1656 = vrot.lane.b32.xlu0 %v1583, 126
        %v1657 = vpop.permute.xlu0 %1656
        %1658 = vrot.lane.b32.xlu0 %v1584, 126
        %v1659 = vpop.permute.xlu0 %1658
        %1660 = vrot.lane.b32.xlu0 %v1585, 126
        %v1661 = vpop.permute.xlu0 %1660
        %1662 = vrot.lane.b32.xlu0 %v1586, 126
        %v1663 = vpop.permute.xlu0 %1662
        %1664 = vrot.lane.b32.xlu0 %v1587, 126
        %v1665 = vpop.permute.xlu0 %1664
        %1666 = vrot.lane.b32.xlu0 %v1588, 126
        %v1667 = vpop.permute.xlu0 %1666
        %1668 = vrot.lane.b32.xlu0 %v1589, 126
        %v1669 = vpop.permute.xlu0 %1668
        %1670 = vrot.lane.b32.xlu0 %v1590, 126
        %v1671 = vpop.permute.xlu0 %1670
        %1672 = vrot.lane.b32.xlu0 %v1591, 126
        %v1673 = vpop.permute.xlu0 %1672
        %1674 = vrot.lane.b32.xlu0 %v1592, 126
        %v1675 = vpop.permute.xlu0 %1674
        %1676 = vrot.lane.b32.xlu0 %v1593, 126
        %v1677 = vpop.permute.xlu0 %1676
        %1678 = vrot.lane.b32.xlu0 %v1594, 126
        %v1679 = vpop.permute.xlu0 %1678
        %1680 = vrot.lane.b32.xlu0 %v1595, 126
        %v1681 = vpop.permute.xlu0 %1680
        %1682 = vrot.lane.b32.xlu0 %v1596, 126
        %v1683 = vpop.permute.xlu0 %1682
        %1684 = vrot.lane.b32.xlu0 %v1597, 126
        %v1685 = vpop.permute.xlu0 %1684
        %1686 = vrot.lane.b32.xlu0 %v1598, 126
        %v1687 = vpop.permute.xlu0 %1686
        %1688 = vrot.lane.b32.xlu0 %v1599, 126
        %v1689 = vpop.permute.xlu0 %1688
        %1690 = vrot.lane.b32.xlu0 %v1600, 126
        %v1691 = vpop.permute.xlu0 %1690
        %1692 = vrot.lane.b32.xlu0 %v1601, 126
        %v1693 = vpop.permute.xlu0 %1692
        %1694 = vrot.lane.b32.xlu0 %v1602, 126
        %v1695 = vpop.permute.xlu0 %1694
        %1696 = vrot.lane.b32.xlu0 %v1603, 126
        %v1697 = vpop.permute.xlu0 %1696
        %1698 = vrot.lane.b32.xlu0 %v1604, 126
        %v1699 = vpop.permute.xlu0 %1698
        %1700 = vrot.lane.b32.xlu0 %v1605, 126
        %v1701 = vpop.permute.xlu0 %1700
        %v1734 = vadd.f32 %v1192, %v1639
        %v1735 = vadd.f32 %v1197, %v1641
        %v1736 = vadd.f32 %v1202, %v1643
        %v1737 = vadd.f32 %v1207, %v1645
        %v1738 = vadd.f32 %v1212, %v1647
        %v1739 = vadd.f32 %v1217, %v1649
        %v1740 = vadd.f32 %v1222, %v1651
        %v1741 = vadd.f32 %v1227, %v1653
        %v1742 = vadd.f32 %v1232, %v1655
        %v1743 = vadd.f32 %v1237, %v1657
        %v1744 = vadd.f32 %v1242, %v1659
        %v1745 = vadd.f32 %v1247, %v1661
        %v1746 = vadd.f32 %v1252, %v1663
        %v1747 = vadd.f32 %v1257, %v1665
        %v1748 = vadd.f32 %v1262, %v1667
        %v1749 = vadd.f32 %v1267, %v1669
        %v1750 = vadd.f32 %v1272, %v1671
        %v1751 = vadd.f32 %v1277, %v1673
        %v1752 = vadd.f32 %v1282, %v1675
        %v1753 = vadd.f32 %v1287, %v1677
        %v1754 = vadd.f32 %v1292, %v1679
        %v1755 = vadd.f32 %v1297, %v1681
        %v1756 = vadd.f32 %v1302, %v1683
        %v1757 = vadd.f32 %v1307, %v1685
        %v1758 = vadd.f32 %v1312, %v1687
        %v1759 = vadd.f32 %v1317, %v1689
        %v1760 = vadd.f32 %v1322, %v1691
        %v1761 = vadd.f32 %v1327, %v1693
        %v1762 = vadd.f32 %v1332, %v1695
        %v1763 = vadd.f32 %v1337, %v1697
        %v1764 = vadd.f32 %v1342, %v1699
        %v1765 = vadd.f32 %v1347, %v1701
        %v1766 = vld [vmem:[%s2 + $0x80] sm:$0x3]
        %v1767 = vld [vmem:[%s3 + $0x3] sm:$0x1]
        %v1768 = vlaneseq
        %v1769 = vshrl.u32 %v1768, 7
        %v1770 = vsub.s32 0, %v1769
        %v1771 = vrot.slane %v1767, %v1770
        %vm1772 = vcmask 15360
        %v1774 = vsel %vm1772, %v1734, 0
        %v1777 = vsel %vm1772, %v1735, 0
        %v1780 = vsel %vm1772, %v1736, 0
        %v1783 = vsel %vm1772, %v1737, 0
        %v1786 = vsel %vm1772, %v1738, 0
        %v1789 = vsel %vm1772, %v1739, 0
        %v1792 = vsel %vm1772, %v1740, 0
        %v1795 = vsel %vm1772, %v1741, 0
        %v1798 = vsel %vm1772, %v1742, 0
        %v1801 = vsel %vm1772, %v1743, 0
        %v1804 = vsel %vm1772, %v1744, 0
        %v1807 = vsel %vm1772, %v1745, 0
        %v1810 = vsel %vm1772, %v1746, 0
        %v1813 = vsel %vm1772, %v1747, 0
        %v1816 = vsel %vm1772, %v1748, 0
        %v1819 = vsel %vm1772, %v1749, 0
        %v1822 = vsel %vm1772, %v1750, 0
        %v1825 = vsel %vm1772, %v1751, 0
        %v1828 = vsel %vm1772, %v1752, 0
        %v1831 = vsel %vm1772, %v1753, 0
        %v1834 = vsel %vm1772, %v1754, 0
        %v1837 = vsel %vm1772, %v1755, 0
        %v1840 = vsel %vm1772, %v1756, 0
        %v1843 = vsel %vm1772, %v1757, 0
        %v1846 = vsel %vm1772, %v1758, 0
        %v1849 = vsel %vm1772, %v1759, 0
        %v1852 = vsel %vm1772, %v1760, 0
        %v1855 = vsel %vm1772, %v1761, 0
        %v1858 = vsel %vm1772, %v1762, 0
        %v1861 = vsel %vm1772, %v1763, 0
        %v1864 = vsel %vm1772, %v1764, 0
        %v1867 = vsel %vm1772, %v1765, 0
        %vm1869 = vcmask 1041408
        %v1871 = vsel %vm1869, %v1766, 0
        %1873 = vmatprep.subr.mxu0 0.0
        %1874 = vmatpush1.msra.mxu0 %v1871
        %1875 = vmatprep.subr.mxu0 0.0
        %1876 = vmatpush1.msra.mxu0 0.0
        %1877 = vmatprep.subr.mxu0 0.0
        %1878 = vmatpush1.msra.mxu0 0.0
        %1879 = vmatprep.subr.mxu0 0.0
        %1880 = vmatpush1.msra.mxu0 0.0
        %1881 = vmatprep.subr.mxu0 0.0
        %1882 = vmatpush1.msra.mxu0 0.0
        %1883 = vmatprep.subr.mxu0 0.0
        %1884 = vmatpush1.msra.mxu0 0.0
        %1885 = vmatprep.subr.mxu0 0.0
        %1886 = vmatpush1.msra.mxu0 0.0
        %1887 = vmatprep.subr.mxu0 0.0
        %1888 = vmatpush1.msra.mxu0 0.0
        %1889 = vmatprep.subr.mxu0 0.0
        %1890 = vmatpush1.msra.mxu0 0.0
        %1891 = vmatprep.subr.mxu0 0.0
        %1892 = vmatpush1.msra.mxu0 0.0
        %1893 = vmatprep.subr.mxu0 0.0
        %1894 = vmatpush1.msra.mxu0 0.0
        %1895 = vmatprep.subr.mxu0 0.0
        %1896 = vmatpush1.msra.mxu0 0.0
        %1897 = vmatprep.subr.mxu0 0.0
        %1898 = vmatpush1.msra.mxu0 0.0
        %1899 = vmatprep.subr.mxu0 0.0
        %1900 = vmatpush1.msra.mxu0 0.0
        %1901 = vmatprep.subr.mxu0 0.0
        %1902 = vmatpush1.msra.mxu0 0.0
        %1903 = vmatprep.subr.mxu0 0.0
        %1904 = vmatpush1.msra.mxu0 0.0
        %1905 = vmatprep.subr.mxu0 0.0
        %1906 = vmatpush1.msra.mxu0 0.0
        %1907 = vmatprep.subr.mxu0 0.0
        %1908 = vmatpush1.msra.mxu0 0.0
        %1909 = vmatprep.subr.mxu0 0.0
        %1910 = vmatpush1.msra.mxu0 0.0
        %1911 = vmatprep.subr.mxu0 0.0
        %1912 = vmatpush1.msra.mxu0 0.0
        %1913 = vmatprep.subr.mxu0 0.0
        %1914 = vmatpush1.msra.mxu0 0.0
        %1915 = vmatprep.subr.mxu0 0.0
        %1916 = vmatpush1.msra.mxu0 0.0
        %1917 = vmatprep.subr.mxu0 0.0
        %1918 = vmatpush1.msra.mxu0 0.0
        %1919 = vmatprep.subr.mxu0 0.0
        %1920 = vmatpush1.msra.mxu0 0.0
        %1921 = vmatprep.subr.mxu0 0.0
        %1922 = vmatpush1.msra.mxu0 0.0
        %1923 = vmatprep.subr.mxu0 0.0
        %1924 = vmatpush1.msra.mxu0 0.0
        %1925 = vmatprep.subr.mxu0 0.0
        %1926 = vmatpush1.msra.mxu0 0.0
        %1927 = vmatprep.subr.mxu0 0.0
        %1928 = vmatpush1.msra.mxu0 0.0
        %1929 = vmatprep.subr.mxu0 0.0
        %1930 = vmatpush1.msra.mxu0 0.0
        %1931 = vmatprep.subr.mxu0 0.0
        %1932 = vmatpush1.msra.mxu0 0.0
        %1933 = vmatprep.subr.mxu0 0.0
        %1934 = vmatpush1.msra.mxu0 0.0
        %1935 = vmatprep.subr.mxu0 0.0
        %1936 = vmatpush1.msra.mxu0 0.0
        %1937 = vmatprep.mubr.f32.mxu0 0.0
        %1938 = vmatmul.mubr.f32.gmra.mrb[0].mxu0 %v1774
        %v1939 = vpop.f32.mrb[0].mxu0
        %v1940 = vadd.f32 %v1771, %v1939
        %v1941 = vpop.f32.mrb[0].mxu0
        %1942 = vmatprep.mubr.f32.mxu0 0.0
        %1943 = vmatmul.mubr.f32.gmra.mrb[0].mxu0 %v1777
        %v1944 = vpop.f32.mrb[0].mxu0
        %v1945 = vadd.f32 %v1771, %v1944
        %v1946 = vpop.f32.mrb[0].mxu0
        %1947 = vmatprep.mubr.f32.mxu0 0.0
        %1948 = vmatmul.mubr.f32.gmra.mrb[0].mxu0 %v1780
        %v1949 = vpop.f32.mrb[0].mxu0
        %v1950 = vadd.f32 %v1771, %v1949
        %v1951 = vpop.f32.mrb[0].mxu0
        %1952 = vmatprep.mubr.f32.mxu0 0.0
        %1953 = vmatmul.mubr.f32.gmra.mrb[0].mxu0 %v1783
        %v1954 = vpop.f32.mrb[0].mxu0
        %v1955 = vadd.f32 %v1771, %v1954
        %v1956 = vpop.f32.mrb[0].mxu0
        %1957 = vmatprep.mubr.f32.mxu0 0.0
        %1958 = vmatmul.mubr.f32.gmra.mrb[0].mxu0 %v1786
        %v1959 = vpop.f32.mrb[0].mxu0
        %v1960 = vadd.f32 %v1771, %v1959
        %v1961 = vpop.f32.mrb[0].mxu0
        %1962 = vmatprep.mubr.f32.mxu0 0.0
        %1963 = vmatmul.mubr.f32.gmra.mrb[0].mxu0 %v1789
        %v1964 = vpop.f32.mrb[0].mxu0
        %v1965 = vadd.f32 %v1771, %v1964
        %v1966 = vpop.f32.mrb[0].mxu0
        %1967 = vmatprep.mubr.f32.mxu0 0.0
        %1968 = vmatmul.mubr.f32.gmra.mrb[0].mxu0 %v1792
        %v1969 = vpop.f32.mrb[0].mxu0
        %v1970 = vadd.f32 %v1771, %v1969
        %v1971 = vpop.f32.mrb[0].mxu0
        %1972 = vmatprep.mubr.f32.mxu0 0.0
        %1973 = vmatmul.mubr.f32.gmra.mrb[0].mxu0 %v1795
        %v1974 = vpop.f32.mrb[0].mxu0
        %v1975 = vadd.f32 %v1771, %v1974
        %v1976 = vpop.f32.mrb[0].mxu0
        %1977 = vmatprep.mubr.f32.mxu0 0.0
        %1978 = vmatmul.mubr.f32.gmra.mrb[0].mxu0 %v1798
        %v1979 = vpop.f32.mrb[0].mxu0
        %v1980 = vadd.f32 %v1771, %v1979
        %v1981 = vpop.f32.mrb[0].mxu0
        %1982 = vmatprep.mubr.f32.mxu0 0.0
        %1983 = vmatmul.mubr.f32.gmra.mrb[0].mxu0 %v1801
        %v1984 = vpop.f32.mrb[0].mxu0
        %v1985 = vadd.f32 %v1771, %v1984
        %v1986 = vpop.f32.mrb[0].mxu0
        %1987 = vmatprep.mubr.f32.mxu0 0.0
        %1988 = vmatmul.mubr.f32.gmra.mrb[0].mxu0 %v1804
        %v1989 = vpop.f32.mrb[0].mxu0
        %v1990 = vadd.f32 %v1771, %v1989
        %v1991 = vpop.f32.mrb[0].mxu0
        %1992 = vmatprep.mubr.f32.mxu0 0.0
        %1993 = vmatmul.mubr.f32.gmra.mrb[0].mxu0 %v1807
        %v1994 = vpop.f32.mrb[0].mxu0
        %v1995 = vadd.f32 %v1771, %v1994
        %v1996 = vpop.f32.mrb[0].mxu0
        %1997 = vmatprep.mubr.f32.mxu0 0.0
        %1998 = vmatmul.mubr.f32.gmra.mrb[0].mxu0 %v1810
        %v1999 = vpop.f32.mrb[0].mxu0
        %v2000 = vadd.f32 %v1771, %v1999
        %v2001 = vpop.f32.mrb[0].mxu0
        %2002 = vmatprep.mubr.f32.mxu0 0.0
        %2003 = vmatmul.mubr.f32.gmra.mrb[0].mxu0 %v1813
        %v2004 = vpop.f32.mrb[0].mxu0
        %v2005 = vadd.f32 %v1771, %v2004
        %v2006 = vpop.f32.mrb[0].mxu0
        %2007 = vmatprep.mubr.f32.mxu0 0.0
        %2008 = vmatmul.mubr.f32.gmra.mrb[0].mxu0 %v1816
        %v2009 = vpop.f32.mrb[0].mxu0
        %v2010 = vadd.f32 %v1771, %v2009
        %v2011 = vpop.f32.mrb[0].mxu0
        %2012 = vmatprep.mubr.f32.mxu0 0.0
        %2013 = vmatmul.mubr.f32.gmra.mrb[0].mxu0 %v1819
        %v2014 = vpop.f32.mrb[0].mxu0
        %v2015 = vadd.f32 %v1771, %v2014
        %v2016 = vpop.f32.mrb[0].mxu0
        %2017 = vmatprep.mubr.f32.mxu0 0.0
        %2018 = vmatmul.mubr.f32.gmra.mrb[0].mxu0 %v1822
        %v2019 = vpop.f32.mrb[0].mxu0
        %v2020 = vadd.f32 %v1771, %v2019
        %v2021 = vpop.f32.mrb[0].mxu0
        %2022 = vmatprep.mubr.f32.mxu0 0.0
        %2023 = vmatmul.mubr.f32.gmra.mrb[0].mxu0 %v1825
        %v2024 = vpop.f32.mrb[0].mxu0
        %v2025 = vadd.f32 %v1771, %v2024
        %v2026 = vpop.f32.mrb[0].mxu0
        %2027 = vmatprep.mubr.f32.mxu0 0.0
        %2028 = vmatmul.mubr.f32.gmra.mrb[0].mxu0 %v1828
        %v2029 = vpop.f32.mrb[0].mxu0
        %v2030 = vadd.f32 %v1771, %v2029
        %v2031 = vpop.f32.mrb[0].mxu0
        %2032 = vmatprep.mubr.f32.mxu0 0.0
        %2033 = vmatmul.mubr.f32.gmra.mrb[0].mxu0 %v1831
        %v2034 = vpop.f32.mrb[0].mxu0
        %v2035 = vadd.f32 %v1771, %v2034
        %v2036 = vpop.f32.mrb[0].mxu0
        %2037 = vmatprep.mubr.f32.mxu0 0.0
        %2038 = vmatmul.mubr.f32.gmra.mrb[0].mxu0 %v1834
        %v2039 = vpop.f32.mrb[0].mxu0
        %v2040 = vadd.f32 %v1771, %v2039
        %v2041 = vpop.f32.mrb[0].mxu0
        %2042 = vmatprep.mubr.f32.mxu0 0.0
        %2043 = vmatmul.mubr.f32.gmra.mrb[0].mxu0 %v1837
        %v2044 = vpop.f32.mrb[0].mxu0
        %v2045 = vadd.f32 %v1771, %v2044
        %v2046 = vpop.f32.mrb[0].mxu0
        %2047 = vmatprep.mubr.f32.mxu0 0.0
        %2048 = vmatmul.mubr.f32.gmra.mrb[0].mxu0 %v1840
        %v2049 = vpop.f32.mrb[0].mxu0
        %v2050 = vadd.f32 %v1771, %v2049
        %v2051 = vpop.f32.mrb[0].mxu0
        %2052 = vmatprep.mubr.f32.mxu0 0.0
        %2053 = vmatmul.mubr.f32.gmra.mrb[0].mxu0 %v1843
        %v2054 = vpop.f32.mrb[0].mxu0
        %v2055 = vadd.f32 %v1771, %v2054
        %v2056 = vpop.f32.mrb[0].mxu0
        %2057 = vmatprep.mubr.f32.mxu0 0.0
        %2058 = vmatmul.mubr.f32.gmra.mrb[0].mxu0 %v1846
        %v2059 = vpop.f32.mrb[0].mxu0
        %v2060 = vadd.f32 %v1771, %v2059
        %v2061 = vpop.f32.mrb[0].mxu0
        %2062 = vmatprep.mubr.f32.mxu0 0.0
        %2063 = vmatmul.mubr.f32.gmra.mrb[0].mxu0 %v1849
        %v2064 = vpop.f32.mrb[0].mxu0
        %v2065 = vadd.f32 %v1771, %v2064
        %v2066 = vpop.f32.mrb[0].mxu0
        %2067 = vmatprep.mubr.f32.mxu0 0.0
        %2068 = vmatmul.mubr.f32.gmra.mrb[0].mxu0 %v1852
        %v2069 = vpop.f32.mrb[0].mxu0
        %v2070 = vadd.f32 %v1771, %v2069
        %v2071 = vpop.f32.mrb[0].mxu0
        %2072 = vmatprep.mubr.f32.mxu0 0.0
        %2073 = vmatmul.mubr.f32.gmra.mrb[0].mxu0 %v1855
        %v2074 = vpop.f32.mrb[0].mxu0
        %v2075 = vadd.f32 %v1771, %v2074
        %v2076 = vpop.f32.mrb[0].mxu0
        %2077 = vmatprep.mubr.f32.mxu0 0.0
        %2078 = vmatmul.mubr.f32.gmra.mrb[0].mxu0 %v1858
        %v2079 = vpop.f32.mrb[0].mxu0
        %v2080 = vadd.f32 %v1771, %v2079
        %v2081 = vpop.f32.mrb[0].mxu0
        %2082 = vmatprep.mubr.f32.mxu0 0.0
        %2083 = vmatmul.mubr.f32.gmra.mrb[0].mxu0 %v1861
        %v2084 = vpop.f32.mrb[0].mxu0
        %v2085 = vadd.f32 %v1771, %v2084
        %v2086 = vpop.f32.mrb[0].mxu0
        %2087 = vmatprep.mubr.f32.mxu0 0.0
        %2088 = vmatmul.mubr.f32.gmra.mrb[0].mxu0 %v1864
        %v2089 = vpop.f32.mrb[0].mxu0
        %v2090 = vadd.f32 %v1771, %v2089
        %v2091 = vpop.f32.mrb[0].mxu0
        %2092 = vmatprep.mubr.f32.mxu0 0.0
        %2093 = vmatmul.mubr.f32.gmra.mrb[0].mxu0 %v1867
        %v2094 = vpop.f32.mrb[0].mxu0
        %v2095 = vadd.f32 %v1771, %v2094
        %v2096 = vpop.f32.mrb[0].mxu0
        %2097 = vdwg.mxu0
        %v2098 = vmax.f32 %v1940, 0.0
        %v2099 = vmax.f32 %v1945, 0.0
        %v2100 = vmax.f32 %v1950, 0.0
        %v2101 = vmax.f32 %v1955, 0.0
        %v2102 = vmax.f32 %v1960, 0.0
        %v2103 = vmax.f32 %v1965, 0.0
        %v2104 = vmax.f32 %v1970, 0.0
        %v2105 = vmax.f32 %v1975, 0.0
        %v2106 = vmax.f32 %v1980, 0.0
        %v2107 = vmax.f32 %v1985, 0.0
        %v2108 = vmax.f32 %v1990, 0.0
        %v2109 = vmax.f32 %v1995, 0.0
        %v2110 = vmax.f32 %v2000, 0.0
        %v2111 = vmax.f32 %v2005, 0.0
        %v2112 = vmax.f32 %v2010, 0.0
        %v2113 = vmax.f32 %v2015, 0.0
        %v2114 = vmax.f32 %v2020, 0.0
        %v2115 = vmax.f32 %v2025, 0.0
        %v2116 = vmax.f32 %v2030, 0.0
        %v2117 = vmax.f32 %v2035, 0.0
        %v2118 = vmax.f32 %v2040, 0.0
        %v2119 = vmax.f32 %v2045, 0.0
        %v2120 = vmax.f32 %v2050, 0.0
        %v2121 = vmax.f32 %v2055, 0.0
        %v2122 = vmax.f32 %v2060, 0.0
        %v2123 = vmax.f32 %v2065, 0.0
        %v2124 = vmax.f32 %v2070, 0.0
        %v2125 = vmax.f32 %v2075, 0.0
        %v2126 = vmax.f32 %v2080, 0.0
        %v2127 = vmax.f32 %v2085, 0.0
        %v2128 = vmax.f32 %v2090, 0.0
        %v2129 = vmax.f32 %v2095, 0.0
        %v2130 = vld [vmem:[%s2 + $0x88] sm:$0xff]
        %v2131 = vld [vmem:[%s2 + $0x90] sm:$0xff]
        %v2132 = vld [vmem:[%s2 + $0x98] sm:$0xff]
        %v2133 = vld [vmem:[%s2 + $0xa0] sm:$0xff]
        %v2134 = vld [vmem:[%s2 + $0xa8] sm:$0xff]
        %v2135 = vld [vmem:[%s2 + $0xb0] sm:$0xff]
        %v2136 = vld [vmem:[%s2 + $0xb8] sm:$0xff]
        %v2137 = vld [vmem:[%s2 + $0xc0] sm:$0xff]
        %v2138 = vld [vmem:[%s3 + $0x4] sm:$0x1]
        %v2139 = vlaneseq
        %v2140 = vshrl.u32 %v2139, 7
        %v2141 = vsub.s32 0, %v2140
        %v2142 = vrot.slane %v2138, %v2141
        %v2144 = vsel %vm665, %v2098, 0
        %v2147 = vsel %vm665, %v2099, 0
        %v2150 = vsel %vm665, %v2100, 0
        %v2153 = vsel %vm665, %v2101, 0
        %v2156 = vsel %vm665, %v2102, 0
        %v2159 = vsel %vm665, %v2103, 0
        %v2162 = vsel %vm665, %v2104, 0
        %v2165 = vsel %vm665, %v2105, 0
        %v2168 = vsel %vm665, %v2106, 0
        %v2171 = vsel %vm665, %v2107, 0
        %v2174 = vsel %vm665, %v2108, 0
        %v2177 = vsel %vm665, %v2109, 0
        %v2180 = vsel %vm665, %v2110, 0
        %v2183 = vsel %vm665, %v2111, 0
        %v2186 = vsel %vm665, %v2112, 0
        %v2189 = vsel %vm665, %v2113, 0
        %v2192 = vsel %vm665, %v2114, 0
        %v2195 = vsel %vm665, %v2115, 0
        %v2198 = vsel %vm665, %v2116, 0
        %v2201 = vsel %vm665, %v2117, 0
        %v2204 = vsel %vm665, %v2118, 0
        %v2207 = vsel %vm665, %v2119, 0
        %v2210 = vsel %vm665, %v2120, 0
        %v2213 = vsel %vm665, %v2121, 0
        %v2216 = vsel %vm665, %v2122, 0
        %v2219 = vsel %vm665, %v2123, 0
        %v2222 = vsel %vm665, %v2124, 0
        %v2225 = vsel %vm665, %v2125, 0
        %v2228 = vsel %vm665, %v2126, 0
        %v2231 = vsel %vm665, %v2127, 0
        %v2234 = vsel %vm665, %v2128, 0
        %v2237 = vsel %vm665, %v2129, 0
        %2239 = vmatprep.subr.mxu0 0.0
        %2240 = vmatpush1.msra.mxu0 %v2130
        %2241 = vmatprep.subr.mxu0 0.0
        %2242 = vmatpush1.msra.mxu0 %v2131
        %2243 = vmatprep.subr.mxu0 0.0
        %2244 = vmatpush1.msra.mxu0 %v2132
        %2245 = vmatprep.subr.mxu0 0.0
        %2246 = vmatpush1.msra.mxu0 %v2133
        %2247 = vmatprep.subr.mxu0 0.0
        %2248 = vmatpush1.msra.mxu0 %v2134
        %2249 = vmatprep.subr.mxu0 0.0
        %2250 = vmatpush1.msra.mxu0 %v2135
        %2251 = vmatprep.subr.mxu0 0.0
        %2252 = vmatpush1.msra.mxu0 %v2136
        %2253 = vmatprep.subr.mxu0 0.0
        %2254 = vmatpush1.msra.mxu0 %v2137
        %2255 = vmatprep.subr.mxu0 0.0
        %2256 = vmatpush1.msra.mxu0 0.0
        %2257 = vmatprep.subr.mxu0 0.0
        %2258 = vmatpush1.msra.mxu0 0.0
        %2259 = vmatprep.subr.mxu0 0.0
        %2260 = vmatpush1.msra.mxu0 0.0
        %2261 = vmatprep.subr.mxu0 0.0
        %2262 = vmatpush1.msra.mxu0 0.0
        %2263 = vmatprep.subr.mxu0 0.0
        %2264 = vmatpush1.msra.mxu0 0.0
        %2265 = vmatprep.subr.mxu0 0.0
        %2266 = vmatpush1.msra.mxu0 0.0
        %2267 = vmatprep.subr.mxu0 0.0
        %2268 = vmatpush1.msra.mxu0 0.0
        %2269 = vmatprep.subr.mxu0 0.0
        %2270 = vmatpush1.msra.mxu0 0.0
        %2271 = vmatprep.subr.mxu0 0.0
        %2272 = vmatpush1.msra.mxu0 0.0
        %2273 = vmatprep.subr.mxu0 0.0
        %2274 = vmatpush1.msra.mxu0 0.0
        %2275 = vmatprep.subr.mxu0 0.0
        %2276 = vmatpush1.msra.mxu0 0.0
        %2277 = vmatprep.subr.mxu0 0.0
        %2278 = vmatpush1.msra.mxu0 0.0
        %2279 = vmatprep.subr.mxu0 0.0
        %2280 = vmatpush1.msra.mxu0 0.0
        %2281 = vmatprep.subr.mxu0 0.0
        %2282 = vmatpush1.msra.mxu0 0.0
        %2283 = vmatprep.subr.mxu0 0.0
        %2284 = vmatpush1.msra.mxu0 0.0
        %2285 = vmatprep.subr.mxu0 0.0
        %2286 = vmatpush1.msra.mxu0 0.0
        %2287 = vmatprep.subr.mxu0 0.0
        %2288 = vmatpush1.msra.mxu0 0.0
        %2289 = vmatprep.subr.mxu0 0.0
        %2290 = vmatpush1.msra.mxu0 0.0
        %2291 = vmatprep.subr.mxu0 0.0
        %2292 = vmatpush1.msra.mxu0 0.0
        %2293 = vmatprep.subr.mxu0 0.0
        %2294 = vmatpush1.msra.mxu0 0.0
        %2295 = vmatprep.subr.mxu0 0.0
        %2296 = vmatpush1.msra.mxu0 0.0
        %2297 = vmatprep.subr.mxu0 0.0
        %2298 = vmatpush1.msra.mxu0 0.0
        %2299 = vmatprep.subr.mxu0 0.0
        %2300 = vmatpush1.msra.mxu0 0.0
        %2301 = vmatprep.subr.mxu0 0.0
        %2302 = vmatpush1.msra.mxu0 0.0
        %2303 = vmatprep.mubr.f32.mxu0 0.0
        %2304 = vmatmul.mubr.f32.gmra.mrb[0].mxu0 %v2144
        %v2305 = vpop.f32.mrb[0].mxu0
        %v2306 = vadd.f32 %v2142, %v2305
        %v2307 = vpop.f32.mrb[0].mxu0
        %2308 = vmatprep.mubr.f32.mxu0 0.0
        %2309 = vmatmul.mubr.f32.gmra.mrb[0].mxu0 %v2147
        %v2310 = vpop.f32.mrb[0].mxu0
        %v2311 = vadd.f32 %v2142, %v2310
        %v2312 = vpop.f32.mrb[0].mxu0
        %2313 = vmatprep.mubr.f32.mxu0 0.0
        %2314 = vmatmul.mubr.f32.gmra.mrb[0].mxu0 %v2150
        %v2315 = vpop.f32.mrb[0].mxu0
        %v2316 = vadd.f32 %v2142, %v2315
        %v2317 = vpop.f32.mrb[0].mxu0
        %2318 = vmatprep.mubr.f32.mxu0 0.0
        %2319 = vmatmul.mubr.f32.gmra.mrb[0].mxu0 %v2153
        %v2320 = vpop.f32.mrb[0].mxu0
        %v2321 = vadd.f32 %v2142, %v2320
        %v2322 = vpop.f32.mrb[0].mxu0
        %2323 = vmatprep.mubr.f32.mxu0 0.0
        %2324 = vmatmul.mubr.f32.gmra.mrb[0].mxu0 %v2156
        %v2325 = vpop.f32.mrb[0].mxu0
        %v2326 = vadd.f32 %v2142, %v2325
        %v2327 = vpop.f32.mrb[0].mxu0
        %2328 = vmatprep.mubr.f32.mxu0 0.0
        %2329 = vmatmul.mubr.f32.gmra.mrb[0].mxu0 %v2159
        %v2330 = vpop.f32.mrb[0].mxu0
        %v2331 = vadd.f32 %v2142, %v2330
        %v2332 = vpop.f32.mrb[0].mxu0
        %2333 = vmatprep.mubr.f32.mxu0 0.0
        %2334 = vmatmul.mubr.f32.gmra.mrb[0].mxu0 %v2162
        %v2335 = vpop.f32.mrb[0].mxu0
        %v2336 = vadd.f32 %v2142, %v2335
        %v2337 = vpop.f32.mrb[0].mxu0
        %2338 = vmatprep.mubr.f32.mxu0 0.0
        %2339 = vmatmul.mubr.f32.gmra.mrb[0].mxu0 %v2165
        %v2340 = vpop.f32.mrb[0].mxu0
        %v2341 = vadd.f32 %v2142, %v2340
        %v2342 = vpop.f32.mrb[0].mxu0
        %2343 = vmatprep.mubr.f32.mxu0 0.0
        %2344 = vmatmul.mubr.f32.gmra.mrb[0].mxu0 %v2168
        %v2345 = vpop.f32.mrb[0].mxu0
        %v2346 = vadd.f32 %v2142, %v2345
        %v2347 = vpop.f32.mrb[0].mxu0
        %2348 = vmatprep.mubr.f32.mxu0 0.0
        %2349 = vmatmul.mubr.f32.gmra.mrb[0].mxu0 %v2171
        %v2350 = vpop.f32.mrb[0].mxu0
        %v2351 = vadd.f32 %v2142, %v2350
        %v2352 = vpop.f32.mrb[0].mxu0
        %2353 = vmatprep.mubr.f32.mxu0 0.0
        %2354 = vmatmul.mubr.f32.gmra.mrb[0].mxu0 %v2174
        %v2355 = vpop.f32.mrb[0].mxu0
        %v2356 = vadd.f32 %v2142, %v2355
        %v2357 = vpop.f32.mrb[0].mxu0
        %2358 = vmatprep.mubr.f32.mxu0 0.0
        %2359 = vmatmul.mubr.f32.gmra.mrb[0].mxu0 %v2177
        %v2360 = vpop.f32.mrb[0].mxu0
        %v2361 = vadd.f32 %v2142, %v2360
        %v2362 = vpop.f32.mrb[0].mxu0
        %2363 = vmatprep.mubr.f32.mxu0 0.0
        %2364 = vmatmul.mubr.f32.gmra.mrb[0].mxu0 %v2180
        %v2365 = vpop.f32.mrb[0].mxu0
        %v2366 = vadd.f32 %v2142, %v2365
        %v2367 = vpop.f32.mrb[0].mxu0
        %2368 = vmatprep.mubr.f32.mxu0 0.0
        %2369 = vmatmul.mubr.f32.gmra.mrb[0].mxu0 %v2183
        %v2370 = vpop.f32.mrb[0].mxu0
        %v2371 = vadd.f32 %v2142, %v2370
        %v2372 = vpop.f32.mrb[0].mxu0
        %2373 = vmatprep.mubr.f32.mxu0 0.0
        %2374 = vmatmul.mubr.f32.gmra.mrb[0].mxu0 %v2186
        %v2375 = vpop.f32.mrb[0].mxu0
        %v2376 = vadd.f32 %v2142, %v2375
        %v2377 = vpop.f32.mrb[0].mxu0
        %2378 = vmatprep.mubr.f32.mxu0 0.0
        %2379 = vmatmul.mubr.f32.gmra.mrb[0].mxu0 %v2189
        %v2380 = vpop.f32.mrb[0].mxu0
        %v2381 = vadd.f32 %v2142, %v2380
        %v2382 = vpop.f32.mrb[0].mxu0
        %2383 = vmatprep.mubr.f32.mxu0 0.0
        %2384 = vmatmul.mubr.f32.gmra.mrb[0].mxu0 %v2192
        %v2385 = vpop.f32.mrb[0].mxu0
        %v2386 = vadd.f32 %v2142, %v2385
        %v2387 = vpop.f32.mrb[0].mxu0
        %2388 = vmatprep.mubr.f32.mxu0 0.0
        %2389 = vmatmul.mubr.f32.gmra.mrb[0].mxu0 %v2195
        %v2390 = vpop.f32.mrb[0].mxu0
        %v2391 = vadd.f32 %v2142, %v2390
        %v2392 = vpop.f32.mrb[0].mxu0
        %2393 = vmatprep.mubr.f32.mxu0 0.0
        %2394 = vmatmul.mubr.f32.gmra.mrb[0].mxu0 %v2198
        %v2395 = vpop.f32.mrb[0].mxu0
        %v2396 = vadd.f32 %v2142, %v2395
        %v2397 = vpop.f32.mrb[0].mxu0
        %2398 = vmatprep.mubr.f32.mxu0 0.0
        %2399 = vmatmul.mubr.f32.gmra.mrb[0].mxu0 %v2201
        %v2400 = vpop.f32.mrb[0].mxu0
        %v2401 = vadd.f32 %v2142, %v2400
        %v2402 = vpop.f32.mrb[0].mxu0
        %2403 = vmatprep.mubr.f32.mxu0 0.0
        %2404 = vmatmul.mubr.f32.gmra.mrb[0].mxu0 %v2204
        %v2405 = vpop.f32.mrb[0].mxu0
        %v2406 = vadd.f32 %v2142, %v2405
        %v2407 = vpop.f32.mrb[0].mxu0
        %2408 = vmatprep.mubr.f32.mxu0 0.0
        %2409 = vmatmul.mubr.f32.gmra.mrb[0].mxu0 %v2207
        %v2410 = vpop.f32.mrb[0].mxu0
        %v2411 = vadd.f32 %v2142, %v2410
        %v2412 = vpop.f32.mrb[0].mxu0
        %2413 = vmatprep.mubr.f32.mxu0 0.0
        %2414 = vmatmul.mubr.f32.gmra.mrb[0].mxu0 %v2210
        %v2415 = vpop.f32.mrb[0].mxu0
        %v2416 = vadd.f32 %v2142, %v2415
        %v2417 = vpop.f32.mrb[0].mxu0
        %2418 = vmatprep.mubr.f32.mxu0 0.0
        %2419 = vmatmul.mubr.f32.gmra.mrb[0].mxu0 %v2213
        %v2420 = vpop.f32.mrb[0].mxu0
        %v2421 = vadd.f32 %v2142, %v2420
        %v2422 = vpop.f32.mrb[0].mxu0
        %2423 = vmatprep.mubr.f32.mxu0 0.0
        %2424 = vmatmul.mubr.f32.gmra.mrb[0].mxu0 %v2216
        %v2425 = vpop.f32.mrb[0].mxu0
        %v2426 = vadd.f32 %v2142, %v2425
        %v2427 = vpop.f32.mrb[0].mxu0
        %2428 = vmatprep.mubr.f32.mxu0 0.0
        %2429 = vmatmul.mubr.f32.gmra.mrb[0].mxu0 %v2219
        %v2430 = vpop.f32.mrb[0].mxu0
        %v2431 = vadd.f32 %v2142, %v2430
        %v2432 = vpop.f32.mrb[0].mxu0
        %2433 = vmatprep.mubr.f32.mxu0 0.0
        %2434 = vmatmul.mubr.f32.gmra.mrb[0].mxu0 %v2222
        %v2435 = vpop.f32.mrb[0].mxu0
        %v2436 = vadd.f32 %v2142, %v2435
        %v2437 = vpop.f32.mrb[0].mxu0
        %2438 = vmatprep.mubr.f32.mxu0 0.0
        %2439 = vmatmul.mubr.f32.gmra.mrb[0].mxu0 %v2225
        %v2440 = vpop.f32.mrb[0].mxu0
        %v2441 = vadd.f32 %v2142, %v2440
        %v2442 = vpop.f32.mrb[0].mxu0
        %2443 = vmatprep.mubr.f32.mxu0 0.0
        %2444 = vmatmul.mubr.f32.gmra.mrb[0].mxu0 %v2228
        %v2445 = vpop.f32.mrb[0].mxu0
        %v2446 = vadd.f32 %v2142, %v2445
        %v2447 = vpop.f32.mrb[0].mxu0
        %2448 = vmatprep.mubr.f32.mxu0 0.0
        %2449 = vmatmul.mubr.f32.gmra.mrb[0].mxu0 %v2231
        %v2450 = vpop.f32.mrb[0].mxu0
        %v2451 = vadd.f32 %v2142, %v2450
        %v2452 = vpop.f32.mrb[0].mxu0
        %2453 = vmatprep.mubr.f32.mxu0 0.0
        %2454 = vmatmul.mubr.f32.gmra.mrb[0].mxu0 %v2234
        %v2455 = vpop.f32.mrb[0].mxu0
        %v2456 = vadd.f32 %v2142, %v2455
        %v2457 = vpop.f32.mrb[0].mxu0
        %2458 = vmatprep.mubr.f32.mxu0 0.0
        %2459 = vmatmul.mubr.f32.gmra.mrb[0].mxu0 %v2237
        %v2460 = vpop.f32.mrb[0].mxu0
        %v2461 = vadd.f32 %v2142, %v2460
        %v2462 = vpop.f32.mrb[0].mxu0
        %2463 = vdwg.mxu0
        %v2464 = vmax.f32 %v2306, 0.0
        %v2465 = vmax.f32 %v2311, 0.0
        %v2466 = vmax.f32 %v2316, 0.0
        %v2467 = vmax.f32 %v2321, 0.0
        %v2468 = vmax.f32 %v2326, 0.0
        %v2469 = vmax.f32 %v2331, 0.0
        %v2470 = vmax.f32 %v2336, 0.0
        %v2471 = vmax.f32 %v2341, 0.0
        %v2472 = vmax.f32 %v2346, 0.0
        %v2473 = vmax.f32 %v2351, 0.0
        %v2474 = vmax.f32 %v2356, 0.0
        %v2475 = vmax.f32 %v2361, 0.0
        %v2476 = vmax.f32 %v2366, 0.0
        %v2477 = vmax.f32 %v2371, 0.0
        %v2478 = vmax.f32 %v2376, 0.0
        %v2479 = vmax.f32 %v2381, 0.0
        %v2480 = vmax.f32 %v2386, 0.0
        %v2481 = vmax.f32 %v2391, 0.0
        %v2482 = vmax.f32 %v2396, 0.0
        %v2483 = vmax.f32 %v2401, 0.0
        %v2484 = vmax.f32 %v2406, 0.0
        %v2485 = vmax.f32 %v2411, 0.0
        %v2486 = vmax.f32 %v2416, 0.0
        %v2487 = vmax.f32 %v2421, 0.0
        %v2488 = vmax.f32 %v2426, 0.0
        %v2489 = vmax.f32 %v2431, 0.0
        %v2490 = vmax.f32 %v2436, 0.0
        %v2491 = vmax.f32 %v2441, 0.0
        %v2492 = vmax.f32 %v2446, 0.0
        %v2493 = vmax.f32 %v2451, 0.0
        %v2494 = vmax.f32 %v2456, 0.0
        %v2495 = vmax.f32 %v2461, 0.0
        %2496 = vst.msk [vmem:[%s207] sm:$0xff] %vm1028, %v2464
        %2497 = vst.msk [vmem:[%s207 + $0x8] sm:$0xff] %vm1028, %v2465
        %2498 = vst.msk [vmem:[%s207 + $0x10] sm:$0xff] %vm1028, %v2466
        %2499 = vst.msk [vmem:[%s207 + $0x18] sm:$0xff] %vm1028, %v2467
        %2500 = vst.msk [vmem:[%s207 + $0x20] sm:$0xff] %vm1028, %v2468
        %2501 = vst.msk [vmem:[%s207 + $0x28] sm:$0xff] %vm1028, %v2469
        %2502 = vst.msk [vmem:[%s207 + $0x30] sm:$0xff] %vm1028, %v2470
        %2503 = vst.msk [vmem:[%s207 + $0x38] sm:$0xff] %vm1028, %v2471
        %2504 = vst.msk [vmem:[%s207 + $0x40] sm:$0xff] %vm1028, %v2472
        %2505 = vst.msk [vmem:[%s207 + $0x48] sm:$0xff] %vm1028, %v2473
        %2506 = vst.msk [vmem:[%s207 + $0x50] sm:$0xff] %vm1028, %v2474
        %2507 = vst.msk [vmem:[%s207 + $0x58] sm:$0xff] %vm1028, %v2475
        %2508 = vst.msk [vmem:[%s207 + $0x60] sm:$0xff] %vm1028, %v2476
        %2509 = vst.msk [vmem:[%s207 + $0x68] sm:$0xff] %vm1028, %v2477
        %2510 = vst.msk [vmem:[%s207 + $0x70] sm:$0xff] %vm1028, %v2478
        %2511 = vst.msk [vmem:[%s207 + $0x78] sm:$0xff] %vm1028, %v2479
        %2512 = vst.msk [vmem:[%s207 + $0x80] sm:$0xff] %vm1028, %v2480
        %2513 = vst.msk [vmem:[%s207 + $0x88] sm:$0xff] %vm1028, %v2481
        %2514 = vst.msk [vmem:[%s207 + $0x90] sm:$0xff] %vm1028, %v2482
        %2515 = vst.msk [vmem:[%s207 + $0x98] sm:$0xff] %vm1028, %v2483
        %2516 = vst.msk [vmem:[%s207 + $0xa0] sm:$0xff] %vm1028, %v2484
        %2517 = vst.msk [vmem:[%s207 + $0xa8] sm:$0xff] %vm1028, %v2485
        %2518 = vst.msk [vmem:[%s207 + $0xb0] sm:$0xff] %vm1028, %v2486
        %2519 = vst.msk [vmem:[%s207 + $0xb8] sm:$0xff] %vm1028, %v2487
        %2520 = vst.msk [vmem:[%s207 + $0xc0] sm:$0xff] %vm1028, %v2488
        %2521 = vst.msk [vmem:[%s207 + $0xc8] sm:$0xff] %vm1028, %v2489
        %2522 = vst.msk [vmem:[%s207 + $0xd0] sm:$0xff] %vm1028, %v2490
        %2523 = vst.msk [vmem:[%s207 + $0xd8] sm:$0xff] %vm1028, %v2491
        %2524 = vst.msk [vmem:[%s207 + $0xe0] sm:$0xff] %vm1028, %v2492
        %2525 = vst.msk [vmem:[%s207 + $0xe8] sm:$0xff] %vm1028, %v2493
        %2526 = vst.msk [vmem:[%s207 + $0xf0] sm:$0xff] %vm1028, %v2494
        %2527 = vst.msk [vmem:[%s207 + $0xf8] sm:$0xff] %vm1028, %v2495
        %2560 = vrot.lane.b32.xlu0 %v1192, 32
        %v2561 = vpop.permute.xlu0 %2560
        %2562 = vrot.lane.b32.xlu0 %v1197, 32
        %v2563 = vpop.permute.xlu0 %2562
        %2564 = vrot.lane.b32.xlu0 %v1202, 32
        %v2565 = vpop.permute.xlu0 %2564
        %2566 = vrot.lane.b32.xlu0 %v1207, 32
        %v2567 = vpop.permute.xlu0 %2566
        %2568 = vrot.lane.b32.xlu0 %v1212, 32
        %v2569 = vpop.permute.xlu0 %2568
        %2570 = vrot.lane.b32.xlu0 %v1217, 32
        %v2571 = vpop.permute.xlu0 %2570
        %2572 = vrot.lane.b32.xlu0 %v1222, 32
        %v2573 = vpop.permute.xlu0 %2572
        %2574 = vrot.lane.b32.xlu0 %v1227, 32
        %v2575 = vpop.permute.xlu0 %2574
        %2576 = vrot.lane.b32.xlu0 %v1232, 32
        %v2577 = vpop.permute.xlu0 %2576
        %2578 = vrot.lane.b32.xlu0 %v1237, 32
        %v2579 = vpop.permute.xlu0 %2578
        %2580 = vrot.lane.b32.xlu0 %v1242, 32
        %v2581 = vpop.permute.xlu0 %2580
        %2582 = vrot.lane.b32.xlu0 %v1247, 32
        %v2583 = vpop.permute.xlu0 %2582
        %2584 = vrot.lane.b32.xlu0 %v1252, 32
        %v2585 = vpop.permute.xlu0 %2584
        %2586 = vrot.lane.b32.xlu0 %v1257, 32
        %v2587 = vpop.permute.xlu0 %2586
        %2588 = vrot.lane.b32.xlu0 %v1262, 32
        %v2589 = vpop.permute.xlu0 %2588
        %2590 = vrot.lane.b32.xlu0 %v1267, 32
        %v2591 = vpop.permute.xlu0 %2590
        %2592 = vrot.lane.b32.xlu0 %v1272, 32
        %v2593 = vpop.permute.xlu0 %2592
        %2594 = vrot.lane.b32.xlu0 %v1277, 32
        %v2595 = vpop.permute.xlu0 %2594
        %2596 = vrot.lane.b32.xlu0 %v1282, 32
        %v2597 = vpop.permute.xlu0 %2596
        %2598 = vrot.lane.b32.xlu0 %v1287, 32
        %v2599 = vpop.permute.xlu0 %2598
        %2600 = vrot.lane.b32.xlu0 %v1292, 32
        %v2601 = vpop.permute.xlu0 %2600
        %2602 = vrot.lane.b32.xlu0 %v1297, 32
        %v2603 = vpop.permute.xlu0 %2602
        %2604 = vrot.lane.b32.xlu0 %v1302, 32
        %v2605 = vpop.permute.xlu0 %2604
        %2606 = vrot.lane.b32.xlu0 %v1307, 32
        %v2607 = vpop.permute.xlu0 %2606
        %2608 = vrot.lane.b32.xlu0 %v1312, 32
        %v2609 = vpop.permute.xlu0 %2608
        %2610 = vrot.lane.b32.xlu0 %v1317, 32
        %v2611 = vpop.permute.xlu0 %2610
        %2612 = vrot.lane.b32.xlu0 %v1322, 32
        %v2613 = vpop.permute.xlu0 %2612
        %2614 = vrot.lane.b32.xlu0 %v1327, 32
        %v2615 = vpop.permute.xlu0 %2614
        %2616 = vrot.lane.b32.xlu0 %v1332, 32
        %v2617 = vpop.permute.xlu0 %2616
        %2618 = vrot.lane.b32.xlu0 %v1337, 32
        %v2619 = vpop.permute.xlu0 %2618
        %2620 = vrot.lane.b32.xlu0 %v1342, 32
        %v2621 = vpop.permute.xlu0 %2620
        %2622 = vrot.lane.b32.xlu0 %v1347, 32
        %v2623 = vpop.permute.xlu0 %2622
        %vm2656 = vcmask 523520
        %2657 = vst.msk [vmem:[%s207] sm:$0xff] %vm2656, %v2561
        %2658 = vst.msk [vmem:[%s207 + $0x8] sm:$0xff] %vm2656, %v2563
        %2659 = vst.msk [vmem:[%s207 + $0x10] sm:$0xff] %vm2656, %v2565
        %2660 = vst.msk [vmem:[%s207 + $0x18] sm:$0xff] %vm2656, %v2567
        %2661 = vst.msk [vmem:[%s207 + $0x20] sm:$0xff] %vm2656, %v2569
        %2662 = vst.msk [vmem:[%s207 + $0x28] sm:$0xff] %vm2656, %v2571
        %2663 = vst.msk [vmem:[%s207 + $0x30] sm:$0xff] %vm2656, %v2573
        %2664 = vst.msk [vmem:[%s207 + $0x38] sm:$0xff] %vm2656, %v2575
        %2665 = vst.msk [vmem:[%s207 + $0x40] sm:$0xff] %vm2656, %v2577
        %2666 = vst.msk [vmem:[%s207 + $0x48] sm:$0xff] %vm2656, %v2579
        %2667 = vst.msk [vmem:[%s207 + $0x50] sm:$0xff] %vm2656, %v2581
        %2668 = vst.msk [vmem:[%s207 + $0x58] sm:$0xff] %vm2656, %v2583
        %2669 = vst.msk [vmem:[%s207 + $0x60] sm:$0xff] %vm2656, %v2585
        %2670 = vst.msk [vmem:[%s207 + $0x68] sm:$0xff] %vm2656, %v2587
        %2671 = vst.msk [vmem:[%s207 + $0x70] sm:$0xff] %vm2656, %v2589
        %2672 = vst.msk [vmem:[%s207 + $0x78] sm:$0xff] %vm2656, %v2591
        %2673 = vst.msk [vmem:[%s207 + $0x80] sm:$0xff] %vm2656, %v2593
        %2674 = vst.msk [vmem:[%s207 + $0x88] sm:$0xff] %vm2656, %v2595
        %2675 = vst.msk [vmem:[%s207 + $0x90] sm:$0xff] %vm2656, %v2597
        %2676 = vst.msk [vmem:[%s207 + $0x98] sm:$0xff] %vm2656, %v2599
        %2677 = vst.msk [vmem:[%s207 + $0xa0] sm:$0xff] %vm2656, %v2601
        %2678 = vst.msk [vmem:[%s207 + $0xa8] sm:$0xff] %vm2656, %v2603
        %2679 = vst.msk [vmem:[%s207 + $0xb0] sm:$0xff] %vm2656, %v2605
        %2680 = vst.msk [vmem:[%s207 + $0xb8] sm:$0xff] %vm2656, %v2607
        %2681 = vst.msk [vmem:[%s207 + $0xc0] sm:$0xff] %vm2656, %v2609
        %2682 = vst.msk [vmem:[%s207 + $0xc8] sm:$0xff] %vm2656, %v2611
        %2683 = vst.msk [vmem:[%s207 + $0xd0] sm:$0xff] %vm2656, %v2613
        %2684 = vst.msk [vmem:[%s207 + $0xd8] sm:$0xff] %vm2656, %v2615
        %2685 = vst.msk [vmem:[%s207 + $0xe0] sm:$0xff] %vm2656, %v2617
        %2686 = vst.msk [vmem:[%s207 + $0xe8] sm:$0xff] %vm2656, %v2619
        %2687 = vst.msk [vmem:[%s207 + $0xf0] sm:$0xff] %vm2656, %v2621
        %2688 = vst.msk [vmem:[%s207 + $0xf8] sm:$0xff] %vm2656, %v2623
        %vm2689 = vcmask 1048064
        %2690 = vst.msk [vmem:[%s207] sm:$0xff] %vm2689, 0.0
        %2691 = vst.msk [vmem:[%s207 + $0x8] sm:$0xff] %vm2689, 0.0
        %2692 = vst.msk [vmem:[%s207 + $0x10] sm:$0xff] %vm2689, 0.0
        %2693 = vst.msk [vmem:[%s207 + $0x18] sm:$0xff] %vm2689, 0.0
        %2694 = vst.msk [vmem:[%s207 + $0x20] sm:$0xff] %vm2689, 0.0
        %2695 = vst.msk [vmem:[%s207 + $0x28] sm:$0xff] %vm2689, 0.0
        %2696 = vst.msk [vmem:[%s207 + $0x30] sm:$0xff] %vm2689, 0.0
        %2697 = vst.msk [vmem:[%s207 + $0x38] sm:$0xff] %vm2689, 0.0
        %2698 = vst.msk [vmem:[%s207 + $0x40] sm:$0xff] %vm2689, 0.0
        %2699 = vst.msk [vmem:[%s207 + $0x48] sm:$0xff] %vm2689, 0.0
        %2700 = vst.msk [vmem:[%s207 + $0x50] sm:$0xff] %vm2689, 0.0
        %2701 = vst.msk [vmem:[%s207 + $0x58] sm:$0xff] %vm2689, 0.0
        %2702 = vst.msk [vmem:[%s207 + $0x60] sm:$0xff] %vm2689, 0.0
        %2703 = vst.msk [vmem:[%s207 + $0x68] sm:$0xff] %vm2689, 0.0
        %2704 = vst.msk [vmem:[%s207 + $0x70] sm:$0xff] %vm2689, 0.0
        %2705 = vst.msk [vmem:[%s207 + $0x78] sm:$0xff] %vm2689, 0.0
        %2706 = vst.msk [vmem:[%s207 + $0x80] sm:$0xff] %vm2689, 0.0
        %2707 = vst.msk [vmem:[%s207 + $0x88] sm:$0xff] %vm2689, 0.0
        %2708 = vst.msk [vmem:[%s207 + $0x90] sm:$0xff] %vm2689, 0.0
        %2709 = vst.msk [vmem:[%s207 + $0x98] sm:$0xff] %vm2689, 0.0
        %2710 = vst.msk [vmem:[%s207 + $0xa0] sm:$0xff] %vm2689, 0.0
        %2711 = vst.msk [vmem:[%s207 + $0xa8] sm:$0xff] %vm2689, 0.0
        %2712 = vst.msk [vmem:[%s207 + $0xb0] sm:$0xff] %vm2689, 0.0
        %2713 = vst.msk [vmem:[%s207 + $0xb8] sm:$0xff] %vm2689, 0.0
        %2714 = vst.msk [vmem:[%s207 + $0xc0] sm:$0xff] %vm2689, 0.0
        %2715 = vst.msk [vmem:[%s207 + $0xc8] sm:$0xff] %vm2689, 0.0
        %2716 = vst.msk [vmem:[%s207 + $0xd0] sm:$0xff] %vm2689, 0.0
        %2717 = vst.msk [vmem:[%s207 + $0xd8] sm:$0xff] %vm2689, 0.0
        %2718 = vst.msk [vmem:[%s207 + $0xe0] sm:$0xff] %vm2689, 0.0
        %2719 = vst.msk [vmem:[%s207 + $0xe8] sm:$0xff] %vm2689, 0.0
        %2720 = vst.msk [vmem:[%s207 + $0xf0] sm:$0xff] %vm2689, 0.0
        %2721 = vst.msk [vmem:[%s207 + $0xf8] sm:$0xff] %vm2689, 0.0
        %s2722 = sand.u32 %s120, 1
        %s2723 = scalar_lea.sflag [#allocation3], %s2722
        %s2724 = sand.u32 %s120, 1
        %s2725 = smul.addr %s2724, 256
        %s2726 = scalar_lea.vmem [#allocation2], %s2725
        // Predicated region
        $region37: #{tpu_custom_call.1} parent=35 // pred_check
          %p2727 = pneg %p130
        $region38: #{tpu_custom_call.1} parent=35 // pred_check_branch
          %2729 = sbr.rel (%p2727) target = $region40
        $region39: #{tpu_custom_call.1} parent=35 // pred_region
          %s2730 = smul.u32 32, %s18
          %s2732 = ssub.s32 4096, 4096
          %2733 = vsyncadd %s2723, %s2732
          %s2734 = smul.addr %s2730, 128
          %s2735 = scalar_lea.hbm %s4, %s2734
          %s2736 = sshll.u32 %s2726, 4
          %s2737 = int_to_ptr.vmem [resolvable:$true] %s2736
          %2742 = dma.vmem_to_hbm [thread:$0]  %s2737, 4096, %s2735, %s2723, 128, 128, 8
        $region40: #{tpu_custom_call.1} parent=35 // pred_fallthru
          _
      $region36: #{tpu_custom_call.1} parent=5 // pred_fallthru
        _
      %p2743 = scmp.le.s32.totalorder 2, %s13
      // Predicated region
      $region41: #{tpu_custom_call.1} parent=5 // pred_check
        %p2744 = pneg %p2743
      $region42: #{tpu_custom_call.1} parent=5 // pred_check_branch
        %2746 = sbr.rel (%p2744) target = $region44
      $region43: #{tpu_custom_call.1} parent=5 // pred_region
        %s2747 = ssub.s32 %s13, 2
        // Predicated region
        $region45: #{tpu_custom_call.1} parent=43 // pred_check
          %p2748 = pneg %p136
        $region46: #{tpu_custom_call.1} parent=43 // pred_check_branch
          %2750 = sbr.rel (%p2748) target = $region48
        $region47: #{tpu_custom_call.1} parent=43 // pred_region
          %s2751 = sand.u32 %s121, 1
          %s2752 = scalar_lea.sflag [#allocation3], %s2751
          %s2753 = sand.u32 %s121, 1
          %s2754 = smul.addr %s2753, 256
          %s2755 = scalar_lea.vmem [#allocation2], %s2754
          %2756 = dma.done %s2752, 4096
        $region48: #{tpu_custom_call.1} parent=43 // pred_fallthru
          _
      $region44: #{tpu_custom_call.1} parent=5 // pred_fallthru
        _
    $region6: #{tpu_custom_call.1} parent=1 // loop_footer
      %s17 = sadd.s32 1, %s13
    $region7: #{tpu_custom_call.1} parent=1 // loop_footer_branch
      %12 = sbr.rel target = $region3
    $region8: #{tpu_custom_call.1} parent=1 // loop_exit
      _
    %2757 = vsyncpa [#allocation3], 1
    %s2758 = scalar_lea.sflag [#allocation3], 1
    %2759 = vsyncpa %s2758, 1

</llo_original>
